<compile_context>
chip_gen: v6e
topology: v6e:2x2x1
jax: 0.10.0
libtpu: 0.0.40
codegen_flags: <defaults>
</compile_context>

<pallas_src>
import jax
import jax.numpy as jnp
import numpy as np
from jax import lax
from jax.experimental import pallas as pl
from jax.experimental.pallas import tpu as pltpu


def _round_up(x, m):
    return ((x + m - 1) // m) * m


# ----------------------------------------------------------------------------
# Host-side weight packing (done once, outside the hot path)
# ----------------------------------------------------------------------------
def _pack_conv_layer(weight, bias, stride, pad, hin, win, cin, nb, hp_in, lp_in):
    """Pack an OIHW conv into (collapsed row-selector, per-tap weight matrices).

    In-kernel activation layout is 2-D with NB images folded along rows:
        A[n*HP_in + h, w*Cin + ci]           (lanes padded to lp_in)
    Per layer:
        T = R2d @ A                           ONE matmul (bf16, exact 0/1 R)
        Y = sum_i T[i*NB*OHP:(i+1)*NB*OHP] @ M_i      kh weight matmuls
    giving Y[n*OHP + oy, ox*Cout + co] = conv(x_n)[co, oy, ox] (pre-bias/ReLU).
    Rows oy >= OH (sublane padding) and lanes >= OW*Cout are never consumed.
    """
    weight = np.asarray(weight, np.float32)          # (cout, cin, kh, kw)
    bias = np.asarray(bias, np.float32)
    cout, cin_w, kh, kw = weight.shape
    assert cin_w == cin
    oh = (hin + 2 * pad - kh) // stride + 1
    ow = (win + 2 * pad - kw) // stride + 1
    ohp = _round_up(oh, 8)                           # sublane-dense output rows
    lp_out = _round_up(ow * cout, 128)               # lane-dense output

    # Collapsed row-selection matrix (block-diagonal over the NB folded images).
    #   row = i*(NB*OHP) + n*OHP + oy ,  col = n*HP_in + h
    R = np.zeros((kh * nb * ohp, nb * hp_in), np.float32)
    for i in range(kh):
        for n in range(nb):
            for oy in range(oh):
                h = stride * oy + i - pad
                if 0 <= h < hin:
                    R[i * nb * ohp + n * ohp + oy, n * hp_in + h] = 1.0

    # Per-tap column-selection + channel-mix matrices (packed conv weights).
    M = np.zeros((kh, lp_in, lp_out), np.float32)
    for i in range(kh):
        for ox in range(ow):
            for j in range(kw):
                w_in = stride * ox + j - pad
                if 0 <= w_in < win:
                    M[i, w_in * cin:(w_in + 1) * cin,
                         ox * cout:(ox + 1) * cout] = weight[:, :, i, j].T

    b_row = np.zeros((1, lp_out), np.float32)
    b_row[0, :ow * cout] = np.tile(bias, ow)

    return {
        "R": jnp.asarray(R, jnp.bfloat16),   # exact 0/1 -> bf16 is lossless
        "M": jnp.asarray(M, jnp.bfloat16),   # bf16 MXU operands, f32 accumulate
        "b": jnp.asarray(b_row, jnp.float32),
        "kh": kh, "oh": oh, "ow": ow, "cout": cout,
        "ohp": ohp, "lp_out": lp_out, "rows_per_tap": nb * ohp,
    }


def _pack_pool(nb, ohp, oh, ow, cout, lp_last):
    """AdaptiveAvgPool2d(1): per-image row-pool matrix (also masks the OH->OHP
    padding rows) + channel-fold matrix, lane/sublane padded for dense stores."""
    out_rows = max(8, _round_up(nb, 8))
    prow = np.zeros((out_rows, nb * ohp), np.float32)
    for n in range(nb):
        prow[n, n * ohp:n * ohp + oh] = 1.0 / float(oh * ow)
    out_lanes = _round_up(cout, 128)
    pcol = np.zeros((lp_last, out_lanes), np.float32)
    for ox in range(ow):
        pcol[ox * cout:(ox + 1) * cout, :cout] = np.eye(cout, dtype=np.float32)
    return (jnp.asarray(prow, jnp.float32), jnp.asarray(pcol, jnp.float32),
            out_rows, out_lanes)


def pack_style_encoder(params, input_hw, nb):
    h, w = input_hw
    assert h % 8 == 0, "input height must be a multiple of 8 for row folding"
    cin = int(np.asarray(params[0]["w"]).shape[1])
    hin, win = h, w
    hp_in = h
    lp_in = _round_up(w * cin, 128)
    layers = []
    for lyr in params:
        pk = _pack_conv_layer(lyr["w"], lyr["b"], lyr["stride"], lyr["pad"],
                              hin, win, cin, nb, hp_in, lp_in)
        layers.append(pk)
        hin, win, cin = pk["oh"], pk["ow"], pk["cout"]
        hp_in, lp_in = pk["ohp"], pk["lp_out"]
    last = layers[-1]
    prow, pcol, out_rows, out_lanes = _pack_pool(
        nb, last["ohp"], last["oh"], last["ow"], last["cout"], last["lp_out"])
    return {
        "layers": layers, "prow": prow, "pcol": pcol,
        "nb": nb, "lp_in": _round_up(w * int(np.asarray(params[0]["w"]).shape[1]), 128),
        "cout": last["cout"], "out_rows": out_rows, "out_lanes": out_lanes,
    }


# ----------------------------------------------------------------------------
# Fused Pallas kernel
# ----------------------------------------------------------------------------
def _make_style_encoder_kernel(n_layers, layer_meta):
    """layer_meta: tuple of (kh, rows_per_tap) per conv layer (static)."""
    def kernel(*refs):
        prow_ref = refs[1 + 3 * n_layers]
        pcol_ref = refs[2 + 3 * n_layers]
        o_ref = refs[3 + 3 * n_layers]

        a = refs[0][...]                                   # (NB*H, 128) f32
        for l in range(n_layers):
            r_ref = refs[1 + 3 * l]
            m_ref = refs[2 + 3 * l]
            b_ref = refs[3 + 3 * l]
            kh, rows = layer_meta[l]
            # Collapsed row selection: ONE bf16 matmul per layer (R is 0/1).
            t = jnp.dot(r_ref[...], a.astype(jnp.bfloat16),
                        preferred_element_type=jnp.float32).astype(jnp.bfloat16)
            acc = None
            for i in range(kh):                            # kh weight matmuls
                y = jnp.dot(t[i * rows:(i + 1) * rows], m_ref[i],
                            preferred_element_type=jnp.float32)
                acc = y if acc is None else acc + y
            a = jnp.maximum(acc + b_ref[...], 0.0)         # bias + ReLU (f32)

        # Fused AdaptiveAvgPool2d(1): per-image row mean, then channel fold.
        s = jnp.dot(prow_ref[...], a, preferred_element_type=jnp.float32)
        o_ref[...] = jnp.dot(s, pcol_ref[...],
                             preferred_element_type=jnp.float32).astype(o_ref.dtype)
    return kernel


def pick_num_programs(n_images):
    """One program per TensorCore on multi-TC devices (v7x / megacore); fold the
    whole batch into a single program on single-TC chips (v5e / v6e)."""
    try:
        kind = jax.devices()[0].device_kind.lower()
    except Exception:
        kind = ""
    if n_images % 2 == 0 and any(t in kind for t in ("v7", "7x", "v4", "v5p")):
        return 2
    return 1


def style_encoder_forward(x_nchw, packed):
    N, C, H, W = x_nchw.shape
    nb = packed["nb"]
    assert N % nb == 0
    num_programs = N // nb
    layers = packed["layers"]
    n_layers = len(layers)
    lp_in = packed["lp_in"]
    out_rows = packed["out_rows"]
    out_lanes = packed["out_lanes"]
    cout = packed["cout"]

    # NCHW -> (N*H, W*C): images stacked along rows, lane index = w*C + c,
    # lane-padded to 128 so every tile is lane-dense.
    x2d = jnp.transpose(x_nchw, (0, 2, 3, 1)).reshape(N * H, W * C)
    x2d = jnp.pad(x2d.astype(jnp.float32), ((0, 0), (0, lp_in - W * C)))

    inputs = [x2d]
    in_specs = [pl.BlockSpec((nb * H, lp_in), lambda p: (p, 0))]
    for lyr in layers:
        for key in ("R", "M", "b"):
            arr = lyr[key]
            inputs.append(arr)
            if arr.ndim == 3:
                in_specs.append(pl.BlockSpec(arr.shape, lambda p: (0, 0, 0)))
            else:
                in_specs.append(pl.BlockSpec(arr.shape, lambda p: (0, 0)))
    inputs += [packed["prow"], packed["pcol"]]
    in_specs += [pl.BlockSpec(packed["prow"].shape, lambda p: (0, 0)),
                 pl.BlockSpec(packed["pcol"].shape, lambda p: (0, 0))]

    layer_meta = tuple((lyr["kh"], lyr["rows_per_tap"]) for lyr in layers)

    out = pl.pallas_call(
        _make_style_encoder_kernel(n_layers, layer_meta),
        out_shape=jax.ShapeDtypeStruct((num_programs * out_rows, out_lanes),
                                       jnp.float32),
        grid_spec=pl.GridSpec(
            grid=(num_programs,),                    # 1 program (v5e/v6e) or 1/TC
            in_specs=in_specs,
            out_specs=pl.BlockSpec((out_rows, out_lanes), lambda p: (p, 0)),
        ),
        compiler_params=pltpu.CompilerParams(
            dimension_semantics=("parallel",)),
    )(*inputs)

    # Drop the sublane/lane padding of the pooled output.
    out = out.reshape(num_programs, out_rows, out_lanes)[:, :nb, :cout]
    return out.reshape(N, cout, 1, 1)                # == AdaptiveAvgPool2d(1)


# ----------------------------------------------------------------------------
# Parameter init (PyTorch-like kaiming-uniform scale) + pure-JAX reference
# ----------------------------------------------------------------------------
def init_style_encoder_params(key, n_downsample, input_dim, dim):
    layer_defs = [(input_dim, dim, 7, 1, 3)]
    d = dim
    for _ in range(2):
        layer_defs.append((d, 2 * d, 4, 2, 1))
        d *= 2
    for _ in range(n_downsample - 2):
        layer_defs.append((d, d, 4, 2, 1))
    params = []
    for (cin, cout, k, s, p) in layer_defs:
        key, kw_, kb_ = jax.random.split(key, 3)
        fan_in = cin * k * k
        bound = 1.0 / np.sqrt(fan_in)
        w = jax.random.uniform(kw_, (cout, cin, k, k), jnp.float32, -bound, bound)
        b = jax.random.uniform(kb_, (cout,), jnp.float32, -bound, bound)
        params.append({"w": w, "b": b, "stride": s, "pad": p})
    return params, d   # d == output_dim


def _ref_forward(x, params):
    h = x
    for layer in params:
        p = layer["pad"]
        h = lax.conv_general_dilated(
            h, layer["w"], window_strides=(layer["stride"],) * 2,
            padding=[(p, p), (p, p)],
            dimension_numbers=("NCHW", "OIHW", "NCHW"),
            precision=lax.Precision.HIGHEST)
        h = h + layer["b"][None, :, None, None]
        h = jnp.maximum(h, 0.0)
    return jnp.mean(h, axis=(2, 3), keepdims=True)


if __name__ == "__main__":
    key = jax.random.PRNGKey(0)
    k_x, k_p = jax.random.split(key)

    # Small shapes consistent with the module.
    N, input_dim, H, W = 2, 3, 16, 16
    n_downsample, dim = 2, 8

    x = jax.random.normal(k_x, (N, input_dim, H, W), jnp.float32)
    params, output_dim = init_style_encoder_params(k_p, n_downsample, input_dim, dim)

    num_programs = pick_num_programs(N)           # 1 on v5e/v6e, 2 on multi-TC
    nb = N // num_programs                        # images folded per program
    packed = pack_style_encoder(params, (H, W), nb)   # one-time weight packing

    out = style_encoder_forward(x, packed)
    out = jax.block_until_ready(out)
    assert out.shape == (N, output_dim, 1, 1), out.shape

    ref = _ref_forward(x, params)
    max_err = float(jnp.max(jnp.abs(out - ref)))
    assert jnp.allclose(out, ref, atol=2e-2, rtol=2e-2), max_err

    print("KERNEL_OK")
</pallas_src>

<mosaic_0001>
module attributes {stable_mosaic.version = 11 : i64} {
  func.func @kernel(%arg0: i32, %arg1: memref<32x128xf32, #tpu.memory_space<vmem>>, %arg2: memref<224x32xbf16, #tpu.memory_space<vmem>>, %arg3: memref<7x128x128xbf16, #tpu.memory_space<vmem>>, %arg4: memref<1x128xf32, #tpu.memory_space<vmem>>, %arg5: memref<64x32xbf16, #tpu.memory_space<vmem>>, %arg6: memref<4x128x128xbf16, #tpu.memory_space<vmem>>, %arg7: memref<1x128xf32, #tpu.memory_space<vmem>>, %arg8: memref<64x16xbf16, #tpu.memory_space<vmem>>, %arg9: memref<4x128x128xbf16, #tpu.memory_space<vmem>>, %arg10: memref<1x128xf32, #tpu.memory_space<vmem>>, %arg11: memref<8x16xf32, #tpu.memory_space<vmem>>, %arg12: memref<128x128xf32, #tpu.memory_space<vmem>>, %arg13: memref<8x128xf32, #tpu.memory_space<vmem>>) attributes {dimension_semantics = [#tpu.dimension_semantics<parallel>], iteration_bounds = array<i64: 1>, scalar_prefetch = 0 : i64, scratch_operands = 0 : i64, tpu.core_type = #tpu.core_type<tc>, window_params = [{transform_indices = @transform_0, window_bounds = array<i64: 32, 128>}, {pipeline_mode = #tpu.pipeline_mode<synchronous>, transform_indices = @transform_1, window_bounds = array<i64: 224, 32>}, {pipeline_mode = #tpu.pipeline_mode<synchronous>, transform_indices = @transform_2, window_bounds = array<i64: 7, 128, 128>}, {pipeline_mode = #tpu.pipeline_mode<synchronous>, transform_indices = @transform_3, window_bounds = array<i64: 1, 128>}, {pipeline_mode = #tpu.pipeline_mode<synchronous>, transform_indices = @transform_4, window_bounds = array<i64: 64, 32>}, {pipeline_mode = #tpu.pipeline_mode<synchronous>, transform_indices = @transform_5, window_bounds = array<i64: 4, 128, 128>}, {pipeline_mode = #tpu.pipeline_mode<synchronous>, transform_indices = @transform_6, window_bounds = array<i64: 1, 128>}, {pipeline_mode = #tpu.pipeline_mode<synchronous>, transform_indices = @transform_7, window_bounds = array<i64: 64, 16>}, {pipeline_mode = #tpu.pipeline_mode<synchronous>, transform_indices = @transform_8, window_bounds = array<i64: 4, 128, 128>}, {pipeline_mode = #tpu.pipeline_mode<synchronous>, transform_indices = @transform_9, window_bounds = array<i64: 1, 128>}, {pipeline_mode = #tpu.pipeline_mode<synchronous>, transform_indices = @transform_10, window_bounds = array<i64: 8, 16>}, {pipeline_mode = #tpu.pipeline_mode<synchronous>, transform_indices = @transform_11, window_bounds = array<i64: 128, 128>}, {transform_indices = @transform_12, window_bounds = array<i64: 8, 128>}]} {
    %c0 = arith.constant 0 : index
    %c0_0 = arith.constant 0 : index
    %0 = vector.load %arg1[%c0, %c0_0] : memref<32x128xf32, #tpu.memory_space<vmem>>, vector<32x128xf32>
    %c0_1 = arith.constant 0 : index
    %c0_2 = arith.constant 0 : index
    %1 = vector.load %arg2[%c0_1, %c0_2] : memref<224x32xbf16, #tpu.memory_space<vmem>>, vector<224x32xbf16>
    %2 = arith.truncf %0 : vector<32x128xf32> to vector<32x128xbf16>
    %cst = arith.constant dense<0.000000e+00> : vector<224x128xf32>
    %3 = tpu.matmul %1, %2, %cst {dimension_numbers = #tpu.dot_dimension_numbers<[1], [0], [0], [1], [0, 0, 1, 1], [], []>} : vector<224x32xbf16>, vector<32x128xbf16>, vector<224x128xf32> -> vector<224x128xf32>
    %4 = arith.truncf %3 : vector<224x128xf32> to vector<224x128xbf16>
    %5 = vector.extract_strided_slice %4 {offsets = [0, 0], sizes = [32, 128], strides = [1, 1]} : vector<224x128xbf16> to vector<32x128xbf16>
    %c0_3 = arith.constant 0 : index
    %c0_4 = arith.constant 0 : index
    %c0_5 = arith.constant 0 : index
    %6 = vector.load %arg3[%c0_3, %c0_4, %c0_5] : memref<7x128x128xbf16, #tpu.memory_space<vmem>>, vector<1x128x128xbf16>
    %7 = vector.shape_cast %6 : vector<1x128x128xbf16> to vector<128x128xbf16>
    %cst_6 = arith.constant dense<0.000000e+00> : vector<32x128xf32>
    %8 = tpu.matmul %5, %7, %cst_6 {dimension_numbers = #tpu.dot_dimension_numbers<[1], [0], [0], [1], [0, 0, 1, 1], [], []>} : vector<32x128xbf16>, vector<128x128xbf16>, vector<32x128xf32> -> vector<32x128xf32>
    %9 = vector.extract_strided_slice %4 {offsets = [32, 0], sizes = [32, 128], strides = [1, 1]} : vector<224x128xbf16> to vector<32x128xbf16>
    %c1 = arith.constant 1 : index
    %c0_7 = arith.constant 0 : index
    %c0_8 = arith.constant 0 : index
    %10 = vector.load %arg3[%c1, %c0_7, %c0_8] : memref<7x128x128xbf16, #tpu.memory_space<vmem>>, vector<1x128x128xbf16>
    %11 = vector.shape_cast %10 : vector<1x128x128xbf16> to vector<128x128xbf16>
    %cst_9 = arith.constant dense<0.000000e+00> : vector<32x128xf32>
    %12 = tpu.matmul %9, %11, %cst_9 {dimension_numbers = #tpu.dot_dimension_numbers<[1], [0], [0], [1], [0, 0, 1, 1], [], []>} : vector<32x128xbf16>, vector<128x128xbf16>, vector<32x128xf32> -> vector<32x128xf32>
    %13 = arith.addf %8, %12 : vector<32x128xf32>
    %14 = vector.extract_strided_slice %4 {offsets = [64, 0], sizes = [32, 128], strides = [1, 1]} : vector<224x128xbf16> to vector<32x128xbf16>
    %c2 = arith.constant 2 : index
    %c0_10 = arith.constant 0 : index
    %c0_11 = arith.constant 0 : index
    %15 = vector.load %arg3[%c2, %c0_10, %c0_11] : memref<7x128x128xbf16, #tpu.memory_space<vmem>>, vector<1x128x128xbf16>
    %16 = vector.shape_cast %15 : vector<1x128x128xbf16> to vector<128x128xbf16>
    %cst_12 = arith.constant dense<0.000000e+00> : vector<32x128xf32>
    %17 = tpu.matmul %14, %16, %cst_12 {dimension_numbers = #tpu.dot_dimension_numbers<[1], [0], [0], [1], [0, 0, 1, 1], [], []>} : vector<32x128xbf16>, vector<128x128xbf16>, vector<32x128xf32> -> vector<32x128xf32>
    %18 = arith.addf %13, %17 : vector<32x128xf32>
    %19 = vector.extract_strided_slice %4 {offsets = [96, 0], sizes = [32, 128], strides = [1, 1]} : vector<224x128xbf16> to vector<32x128xbf16>
    %c3 = arith.constant 3 : index
    %c0_13 = arith.constant 0 : index
    %c0_14 = arith.constant 0 : index
    %20 = vector.load %arg3[%c3, %c0_13, %c0_14] : memref<7x128x128xbf16, #tpu.memory_space<vmem>>, vector<1x128x128xbf16>
    %21 = vector.shape_cast %20 : vector<1x128x128xbf16> to vector<128x128xbf16>
    %cst_15 = arith.constant dense<0.000000e+00> : vector<32x128xf32>
    %22 = tpu.matmul %19, %21, %cst_15 {dimension_numbers = #tpu.dot_dimension_numbers<[1], [0], [0], [1], [0, 0, 1, 1], [], []>} : vector<32x128xbf16>, vector<128x128xbf16>, vector<32x128xf32> -> vector<32x128xf32>
    %23 = arith.addf %18, %22 : vector<32x128xf32>
    %24 = vector.extract_strided_slice %4 {offsets = [128, 0], sizes = [32, 128], strides = [1, 1]} : vector<224x128xbf16> to vector<32x128xbf16>
    %c4 = arith.constant 4 : index
    %c0_16 = arith.constant 0 : index
    %c0_17 = arith.constant 0 : index
    %25 = vector.load %arg3[%c4, %c0_16, %c0_17] : memref<7x128x128xbf16, #tpu.memory_space<vmem>>, vector<1x128x128xbf16>
    %26 = vector.shape_cast %25 : vector<1x128x128xbf16> to vector<128x128xbf16>
    %cst_18 = arith.constant dense<0.000000e+00> : vector<32x128xf32>
    %27 = tpu.matmul %24, %26, %cst_18 {dimension_numbers = #tpu.dot_dimension_numbers<[1], [0], [0], [1], [0, 0, 1, 1], [], []>} : vector<32x128xbf16>, vector<128x128xbf16>, vector<32x128xf32> -> vector<32x128xf32>
    %28 = arith.addf %23, %27 : vector<32x128xf32>
    %29 = vector.extract_strided_slice %4 {offsets = [160, 0], sizes = [32, 128], strides = [1, 1]} : vector<224x128xbf16> to vector<32x128xbf16>
    %c5 = arith.constant 5 : index
    %c0_19 = arith.constant 0 : index
    %c0_20 = arith.constant 0 : index
    %30 = vector.load %arg3[%c5, %c0_19, %c0_20] : memref<7x128x128xbf16, #tpu.memory_space<vmem>>, vector<1x128x128xbf16>
    %31 = vector.shape_cast %30 : vector<1x128x128xbf16> to vector<128x128xbf16>
    %cst_21 = arith.constant dense<0.000000e+00> : vector<32x128xf32>
    %32 = tpu.matmul %29, %31, %cst_21 {dimension_numbers = #tpu.dot_dimension_numbers<[1], [0], [0], [1], [0, 0, 1, 1], [], []>} : vector<32x128xbf16>, vector<128x128xbf16>, vector<32x128xf32> -> vector<32x128xf32>
    %33 = arith.addf %28, %32 : vector<32x128xf32>
    %34 = vector.extract_strided_slice %4 {offsets = [192, 0], sizes = [32, 128], strides = [1, 1]} : vector<224x128xbf16> to vector<32x128xbf16>
    %c6 = arith.constant 6 : index
    %c0_22 = arith.constant 0 : index
    %c0_23 = arith.constant 0 : index
    %35 = vector.load %arg3[%c6, %c0_22, %c0_23] : memref<7x128x128xbf16, #tpu.memory_space<vmem>>, vector<1x128x128xbf16>
    %36 = vector.shape_cast %35 : vector<1x128x128xbf16> to vector<128x128xbf16>
    %cst_24 = arith.constant dense<0.000000e+00> : vector<32x128xf32>
    %37 = tpu.matmul %34, %36, %cst_24 {dimension_numbers = #tpu.dot_dimension_numbers<[1], [0], [0], [1], [0, 0, 1, 1], [], []>} : vector<32x128xbf16>, vector<128x128xbf16>, vector<32x128xf32> -> vector<32x128xf32>
    %38 = arith.addf %33, %37 : vector<32x128xf32>
    %c0_25 = arith.constant 0 : index
    %c0_26 = arith.constant 0 : index
    %39 = vector.load %arg4[%c0_25, %c0_26] : memref<1x128xf32, #tpu.memory_space<vmem>>, vector<1x128xf32>
    %40 = vector.broadcast %39 : vector<1x128xf32> to vector<32x128xf32>
    %41 = arith.addf %38, %40 : vector<32x128xf32>
    %cst_27 = arith.constant 0.000000e+00 : f32
    %42 = vector.broadcast %cst_27 : f32 to vector<32x128xf32>
    %43 = arith.maximumf %41, %42 : vector<32x128xf32>
    %c0_28 = arith.constant 0 : index
    %c0_29 = arith.constant 0 : index
    %44 = vector.load %arg5[%c0_28, %c0_29] : memref<64x32xbf16, #tpu.memory_space<vmem>>, vector<64x32xbf16>
    %45 = arith.truncf %43 : vector<32x128xf32> to vector<32x128xbf16>
    %cst_30 = arith.constant dense<0.000000e+00> : vector<64x128xf32>
    %46 = tpu.matmul %44, %45, %cst_30 {dimension_numbers = #tpu.dot_dimension_numbers<[1], [0], [0], [1], [0, 0, 1, 1], [], []>} : vector<64x32xbf16>, vector<32x128xbf16>, vector<64x128xf32> -> vector<64x128xf32>
    %47 = arith.truncf %46 : vector<64x128xf32> to vector<64x128xbf16>
    %48 = vector.extract_strided_slice %47 {offsets = [0, 0], sizes = [16, 128], strides = [1, 1]} : vector<64x128xbf16> to vector<16x128xbf16>
    %c0_31 = arith.constant 0 : index
    %c0_32 = arith.constant 0 : index
    %c0_33 = arith.constant 0 : index
    %49 = vector.load %arg6[%c0_31, %c0_32, %c0_33] : memref<4x128x128xbf16, #tpu.memory_space<vmem>>, vector<1x128x128xbf16>
    %50 = vector.shape_cast %49 : vector<1x128x128xbf16> to vector<128x128xbf16>
    %cst_34 = arith.constant dense<0.000000e+00> : vector<16x128xf32>
    %51 = tpu.matmul %48, %50, %cst_34 {dimension_numbers = #tpu.dot_dimension_numbers<[1], [0], [0], [1], [0, 0, 1, 1], [], []>} : vector<16x128xbf16>, vector<128x128xbf16>, vector<16x128xf32> -> vector<16x128xf32>
    %52 = vector.extract_strided_slice %47 {offsets = [16, 0], sizes = [16, 128], strides = [1, 1]} : vector<64x128xbf16> to vector<16x128xbf16>
    %c1_35 = arith.constant 1 : index
    %c0_36 = arith.constant 0 : index
    %c0_37 = arith.constant 0 : index
    %53 = vector.load %arg6[%c1_35, %c0_36, %c0_37] : memref<4x128x128xbf16, #tpu.memory_space<vmem>>, vector<1x128x128xbf16>
    %54 = vector.shape_cast %53 : vector<1x128x128xbf16> to vector<128x128xbf16>
    %cst_38 = arith.constant dense<0.000000e+00> : vector<16x128xf32>
    %55 = tpu.matmul %52, %54, %cst_38 {dimension_numbers = #tpu.dot_dimension_numbers<[1], [0], [0], [1], [0, 0, 1, 1], [], []>} : vector<16x128xbf16>, vector<128x128xbf16>, vector<16x128xf32> -> vector<16x128xf32>
    %56 = arith.addf %51, %55 : vector<16x128xf32>
    %57 = vector.extract_strided_slice %47 {offsets = [32, 0], sizes = [16, 128], strides = [1, 1]} : vector<64x128xbf16> to vector<16x128xbf16>
    %c2_39 = arith.constant 2 : index
    %c0_40 = arith.constant 0 : index
    %c0_41 = arith.constant 0 : index
    %58 = vector.load %arg6[%c2_39, %c0_40, %c0_41] : memref<4x128x128xbf16, #tpu.memory_space<vmem>>, vector<1x128x128xbf16>
    %59 = vector.shape_cast %58 : vector<1x128x128xbf16> to vector<128x128xbf16>
    %cst_42 = arith.constant dense<0.000000e+00> : vector<16x128xf32>
    %60 = tpu.matmul %57, %59, %cst_42 {dimension_numbers = #tpu.dot_dimension_numbers<[1], [0], [0], [1], [0, 0, 1, 1], [], []>} : vector<16x128xbf16>, vector<128x128xbf16>, vector<16x128xf32> -> vector<16x128xf32>
    %61 = arith.addf %56, %60 : vector<16x128xf32>
    %62 = vector.extract_strided_slice %47 {offsets = [48, 0], sizes = [16, 128], strides = [1, 1]} : vector<64x128xbf16> to vector<16x128xbf16>
    %c3_43 = arith.constant 3 : index
    %c0_44 = arith.constant 0 : index
    %c0_45 = arith.constant 0 : index
    %63 = vector.load %arg6[%c3_43, %c0_44, %c0_45] : memref<4x128x128xbf16, #tpu.memory_space<vmem>>, vector<1x128x128xbf16>
    %64 = vector.shape_cast %63 : vector<1x128x128xbf16> to vector<128x128xbf16>
    %cst_46 = arith.constant dense<0.000000e+00> : vector<16x128xf32>
    %65 = tpu.matmul %62, %64, %cst_46 {dimension_numbers = #tpu.dot_dimension_numbers<[1], [0], [0], [1], [0, 0, 1, 1], [], []>} : vector<16x128xbf16>, vector<128x128xbf16>, vector<16x128xf32> -> vector<16x128xf32>
    %66 = arith.addf %61, %65 : vector<16x128xf32>
    %c0_47 = arith.constant 0 : index
    %c0_48 = arith.constant 0 : index
    %67 = vector.load %arg7[%c0_47, %c0_48] : memref<1x128xf32, #tpu.memory_space<vmem>>, vector<1x128xf32>
    %68 = vector.broadcast %67 : vector<1x128xf32> to vector<16x128xf32>
    %69 = arith.addf %66, %68 : vector<16x128xf32>
    %cst_49 = arith.constant 0.000000e+00 : f32
    %70 = vector.broadcast %cst_49 : f32 to vector<16x128xf32>
    %71 = arith.maximumf %69, %70 : vector<16x128xf32>
    %c0_50 = arith.constant 0 : index
    %c0_51 = arith.constant 0 : index
    %72 = vector.load %arg8[%c0_50, %c0_51] : memref<64x16xbf16, #tpu.memory_space<vmem>>, vector<64x16xbf16>
    %73 = arith.truncf %71 : vector<16x128xf32> to vector<16x128xbf16>
    %cst_52 = arith.constant dense<0.000000e+00> : vector<64x128xf32>
    %74 = tpu.matmul %72, %73, %cst_52 {dimension_numbers = #tpu.dot_dimension_numbers<[1], [0], [0], [1], [0, 0, 1, 1], [], []>} : vector<64x16xbf16>, vector<16x128xbf16>, vector<64x128xf32> -> vector<64x128xf32>
    %75 = arith.truncf %74 : vector<64x128xf32> to vector<64x128xbf16>
    %76 = vector.extract_strided_slice %75 {offsets = [0, 0], sizes = [16, 128], strides = [1, 1]} : vector<64x128xbf16> to vector<16x128xbf16>
    %c0_53 = arith.constant 0 : index
    %c0_54 = arith.constant 0 : index
    %c0_55 = arith.constant 0 : index
    %77 = vector.load %arg9[%c0_53, %c0_54, %c0_55] : memref<4x128x128xbf16, #tpu.memory_space<vmem>>, vector<1x128x128xbf16>
    %78 = vector.shape_cast %77 : vector<1x128x128xbf16> to vector<128x128xbf16>
    %cst_56 = arith.constant dense<0.000000e+00> : vector<16x128xf32>
    %79 = tpu.matmul %76, %78, %cst_56 {dimension_numbers = #tpu.dot_dimension_numbers<[1], [0], [0], [1], [0, 0, 1, 1], [], []>} : vector<16x128xbf16>, vector<128x128xbf16>, vector<16x128xf32> -> vector<16x128xf32>
    %80 = vector.extract_strided_slice %75 {offsets = [16, 0], sizes = [16, 128], strides = [1, 1]} : vector<64x128xbf16> to vector<16x128xbf16>
    %c1_57 = arith.constant 1 : index
    %c0_58 = arith.constant 0 : index
    %c0_59 = arith.constant 0 : index
    %81 = vector.load %arg9[%c1_57, %c0_58, %c0_59] : memref<4x128x128xbf16, #tpu.memory_space<vmem>>, vector<1x128x128xbf16>
    %82 = vector.shape_cast %81 : vector<1x128x128xbf16> to vector<128x128xbf16>
    %cst_60 = arith.constant dense<0.000000e+00> : vector<16x128xf32>
    %83 = tpu.matmul %80, %82, %cst_60 {dimension_numbers = #tpu.dot_dimension_numbers<[1], [0], [0], [1], [0, 0, 1, 1], [], []>} : vector<16x128xbf16>, vector<128x128xbf16>, vector<16x128xf32> -> vector<16x128xf32>
    %84 = arith.addf %79, %83 : vector<16x128xf32>
    %85 = vector.extract_strided_slice %75 {offsets = [32, 0], sizes = [16, 128], strides = [1, 1]} : vector<64x128xbf16> to vector<16x128xbf16>
    %c2_61 = arith.constant 2 : index
    %c0_62 = arith.constant 0 : index
    %c0_63 = arith.constant 0 : index
    %86 = vector.load %arg9[%c2_61, %c0_62, %c0_63] : memref<4x128x128xbf16, #tpu.memory_space<vmem>>, vector<1x128x128xbf16>
    %87 = vector.shape_cast %86 : vector<1x128x128xbf16> to vector<128x128xbf16>
    %cst_64 = arith.constant dense<0.000000e+00> : vector<16x128xf32>
    %88 = tpu.matmul %85, %87, %cst_64 {dimension_numbers = #tpu.dot_dimension_numbers<[1], [0], [0], [1], [0, 0, 1, 1], [], []>} : vector<16x128xbf16>, vector<128x128xbf16>, vector<16x128xf32> -> vector<16x128xf32>
    %89 = arith.addf %84, %88 : vector<16x128xf32>
    %90 = vector.extract_strided_slice %75 {offsets = [48, 0], sizes = [16, 128], strides = [1, 1]} : vector<64x128xbf16> to vector<16x128xbf16>
    %c3_65 = arith.constant 3 : index
    %c0_66 = arith.constant 0 : index
    %c0_67 = arith.constant 0 : index
    %91 = vector.load %arg9[%c3_65, %c0_66, %c0_67] : memref<4x128x128xbf16, #tpu.memory_space<vmem>>, vector<1x128x128xbf16>
    %92 = vector.shape_cast %91 : vector<1x128x128xbf16> to vector<128x128xbf16>
    %cst_68 = arith.constant dense<0.000000e+00> : vector<16x128xf32>
    %93 = tpu.matmul %90, %92, %cst_68 {dimension_numbers = #tpu.dot_dimension_numbers<[1], [0], [0], [1], [0, 0, 1, 1], [], []>} : vector<16x128xbf16>, vector<128x128xbf16>, vector<16x128xf32> -> vector<16x128xf32>
    %94 = arith.addf %89, %93 : vector<16x128xf32>
    %c0_69 = arith.constant 0 : index
    %c0_70 = arith.constant 0 : index
    %95 = vector.load %arg10[%c0_69, %c0_70] : memref<1x128xf32, #tpu.memory_space<vmem>>, vector<1x128xf32>
    %96 = vector.broadcast %95 : vector<1x128xf32> to vector<16x128xf32>
    %97 = arith.addf %94, %96 : vector<16x128xf32>
    %cst_71 = arith.constant 0.000000e+00 : f32
    %98 = vector.broadcast %cst_71 : f32 to vector<16x128xf32>
    %99 = arith.maximumf %97, %98 : vector<16x128xf32>
    %c0_72 = arith.constant 0 : index
    %c0_73 = arith.constant 0 : index
    %100 = vector.load %arg11[%c0_72, %c0_73] : memref<8x16xf32, #tpu.memory_space<vmem>>, vector<8x16xf32>
    %cst_74 = arith.constant dense<0.000000e+00> : vector<8x128xf32>
    %101 = tpu.matmul %100, %99, %cst_74 {dimension_numbers = #tpu.dot_dimension_numbers<[1], [0], [0], [1], [0, 0, 1, 1], [], []>} : vector<8x16xf32>, vector<16x128xf32>, vector<8x128xf32> -> vector<8x128xf32>
    %c0_75 = arith.constant 0 : index
    %c0_76 = arith.constant 0 : index
    %102 = vector.load %arg12[%c0_75, %c0_76] : memref<128x128xf32, #tpu.memory_space<vmem>>, vector<128x128xf32>
    %cst_77 = arith.constant dense<0.000000e+00> : vector<8x128xf32>
    %103 = tpu.matmul %101, %102, %cst_77 {dimension_numbers = #tpu.dot_dimension_numbers<[1], [0], [0], [1], [0, 0, 1, 1], [], []>} : vector<8x128xf32>, vector<128x128xf32>, vector<8x128xf32> -> vector<8x128xf32>
    %c0_78 = arith.constant 0 : index
    %c0_79 = arith.constant 0 : index
    %104 = vector.load %arg13[%c0_78, %c0_79] : memref<8x128xf32, #tpu.memory_space<vmem>>, vector<8x128xf32>
    tpu.vector_store %arg13[%c0_78, %c0_79], %103 {strides = array<i32>} : memref<8x128xf32, #tpu.memory_space<vmem>>, vector<8x128xf32>,
    return
  }
  func.func @transform_0(%arg0: i32) -> (i32, i32) {
    %c0_i32 = arith.constant 0 : i32
    %c0_i32_0 = arith.constant 0 : i32
    return %arg0, %c0_i32 : i32, i32
  }
  func.func @transform_1(%arg0: i32) -> (i32, i32) {
    %c0_i32 = arith.constant 0 : i32
    %c0_i32_0 = arith.constant 0 : i32
    %c0_i32_1 = arith.constant 0 : i32
    return %c0_i32, %c0_i32_0 : i32, i32
  }
  func.func @transform_2(%arg0: i32) -> (i32, i32, i32) {
    %c0_i32 = arith.constant 0 : i32
    %c0_i32_0 = arith.constant 0 : i32
    %c0_i32_1 = arith.constant 0 : i32
    %c0_i32_2 = arith.constant 0 : i32
    return %c0_i32, %c0_i32_0, %c0_i32_1 : i32, i32, i32
  }
  func.func @transform_3(%arg0: i32) -> (i32, i32) {
    %c0_i32 = arith.constant 0 : i32
    %c0_i32_0 = arith.constant 0 : i32
    %c0_i32_1 = arith.constant 0 : i32
    return %c0_i32, %c0_i32_0 : i32, i32
  }
  func.func @transform_4(%arg0: i32) -> (i32, i32) {
    %c0_i32 = arith.constant 0 : i32
    %c0_i32_0 = arith.constant 0 : i32
    %c0_i32_1 = arith.constant 0 : i32
    return %c0_i32, %c0_i32_0 : i32, i32
  }
  func.func @transform_5(%arg0: i32) -> (i32, i32, i32) {
    %c0_i32 = arith.constant 0 : i32
    %c0_i32_0 = arith.constant 0 : i32
    %c0_i32_1 = arith.constant 0 : i32
    %c0_i32_2 = arith.constant 0 : i32
    return %c0_i32, %c0_i32_0, %c0_i32_1 : i32, i32, i32
  }
  func.func @transform_6(%arg0: i32) -> (i32, i32) {
    %c0_i32 = arith.constant 0 : i32
    %c0_i32_0 = arith.constant 0 : i32
    %c0_i32_1 = arith.constant 0 : i32
    return %c0_i32, %c0_i32_0 : i32, i32
  }
  func.func @transform_7(%arg0: i32) -> (i32, i32) {
    %c0_i32 = arith.constant 0 : i32
    %c0_i32_0 = arith.constant 0 : i32
    %c0_i32_1 = arith.constant 0 : i32
    return %c0_i32, %c0_i32_0 : i32, i32
  }
  func.func @transform_8(%arg0: i32) -> (i32, i32, i32) {
    %c0_i32 = arith.constant 0 : i32
    %c0_i32_0 = arith.constant 0 : i32
    %c0_i32_1 = arith.constant 0 : i32
    %c0_i32_2 = arith.constant 0 : i32
    return %c0_i32, %c0_i32_0, %c0_i32_1 : i32, i32, i32
  }
  func.func @transform_9(%arg0: i32) -> (i32, i32) {
    %c0_i32 = arith.constant 0 : i32
    %c0_i32_0 = arith.constant 0 : i32
    %c0_i32_1 = arith.constant 0 : i32
    return %c0_i32, %c0_i32_0 : i32, i32
  }
  func.func @transform_10(%arg0: i32) -> (i32, i32) {
    %c0_i32 = arith.constant 0 : i32
    %c0_i32_0 = arith.constant 0 : i32
    %c0_i32_1 = arith.constant 0 : i32
    return %c0_i32, %c0_i32_0 : i32, i32
  }
  func.func @transform_11(%arg0: i32) -> (i32, i32) {
    %c0_i32 = arith.constant 0 : i32
    %c0_i32_0 = arith.constant 0 : i32
    %c0_i32_1 = arith.constant 0 : i32
    return %c0_i32, %c0_i32_0 : i32, i32
  }
  func.func @transform_12(%arg0: i32) -> (i32, i32) {
    %c0_i32 = arith.constant 0 : i32
    %c0_i32_0 = arith.constant 0 : i32
    return %arg0, %c0_i32 : i32, i32
  }
}

</mosaic_0001>

<llo_original>
// kernel: tpu_custom_call.1
$region0: #{tpu_custom_call.1}
  #allocation0 [shape = 'u32[]', space=smem, size = 0x4, offset = 0x4, fixed_abs, tag = 'smem constant byte address 0x4 - core index']
  #allocation1 [shape = 'u32[144,128]{1,0:T(1,128)}', space=vmem, size = 0x12000, scoped, tag = 'internal scratch']
  %s0 = inlined_call_operand.vmem [shape: f32[32,128], index: 0, kind: input, shape index: {}]
  %s1 = inlined_call_operand.vmem [shape: bf16[224,32], index: 1, kind: input, shape index: {}]
  %s2 = inlined_call_operand.hbm [shape: bf16[7,128,128], index: 2, kind: input, shape index: {}]
  %s3 = inlined_call_operand.vmem [shape: f32[1,128], index: 3, kind: input, shape index: {}]
  %s4 = inlined_call_operand.vmem [shape: bf16[64,32], index: 4, kind: input, shape index: {}]
  %s5 = inlined_call_operand.hbm [shape: bf16[4,128,128], index: 5, kind: input, shape index: {}]
  %s6 = inlined_call_operand.vmem [shape: f32[1,128], index: 6, kind: input, shape index: {}]
  %s7 = inlined_call_operand.vmem [shape: bf16[64,16], index: 7, kind: input, shape index: {}]
  %s8 = inlined_call_operand.hbm [shape: bf16[4,128,128], index: 8, kind: input, shape index: {}]
  %s9 = inlined_call_operand.vmem [shape: f32[1,128], index: 9, kind: input, shape index: {}]
  %s10 = inlined_call_operand.vmem [shape: f32[8,16], index: 10, kind: input, shape index: {}]
  %s11 = inlined_call_operand.vmem [shape: f32[128,128], index: 11, kind: input, shape index: {}]
  %s12 = inlined_call_operand.hbm [shape: f32[8,128], index: 12, kind: output, shape index: {}]
  %s13 = sld [smem:[#allocation0]]
  $region70: #{tpu_custom_call.1} parent=0
    _
  %s15 = ssub.s32 1, %s13
  %s16 = scalar_select 0, %s15, %s13
  $region1: #{tpu_custom_call.1} parent=0
    #allocation2 [shape = 'u8[229376]{0}', space=vmem, size = 0x38000, scoped, tag = 'input window, operand 2, single buffered']
    #allocation3 [shape = 's32[1]{0}', space=sflag, size = 0x4, scoped, tag = 'scoped memory for tpu_custom_call.1']
    #allocation4 [shape = 's32[1]{0}', space=sflag, size = 0x4, scoped, tag = 'scoped memory for tpu_custom_call.1']
    #allocation5 [shape = 'u8[131072]{0}', space=vmem, size = 0x20000, scoped, tag = 'input window, operand 5, single buffered']
    #allocation6 [shape = 's32[1]{0}', space=sflag, size = 0x4, scoped, tag = 'scoped memory for tpu_custom_call.1']
    #allocation7 [shape = 'u8[131072]{0}', space=vmem, size = 0x20000, scoped, tag = 'input window, operand 8, single buffered']
    #allocation8 [shape = 'u8[4096]{0}', space=vmem, size = 0x1000, scoped, tag = 'output window, operand 0, single buffered']
    %17 = vsyncpa [#allocation3], 0
    %18 = vsyncpa [#allocation6], 0
    %19 = vsyncpa [#allocation4], 0
    // Predicated region
    $region2: #{tpu_custom_call.1} parent=1 // pred_check
      _
    $region3: #{tpu_custom_call.1} parent=1 // pred_check_branch
      %21 = sbr.rel (0) target = $region5
    $region4: #{tpu_custom_call.1} parent=1 // pred_region
      _
    $region5: #{tpu_custom_call.1} parent=1 // pred_fallthru
      _
    // Predicated region
    $region6: #{tpu_custom_call.1} parent=1 // pred_check
      _
    $region7: #{tpu_custom_call.1} parent=1 // pred_check_branch
      %23 = sbr.rel (0) target = $region9
    $region8: #{tpu_custom_call.1} parent=1 // pred_region
      _
    $region9: #{tpu_custom_call.1} parent=1 // pred_fallthru
      _
    // Predicated region
    $region10: #{tpu_custom_call.1} parent=1 // pred_check
      _
    $region11: #{tpu_custom_call.1} parent=1 // pred_check_branch
      %25 = sbr.rel (0) target = $region13
    $region12: #{tpu_custom_call.1} parent=1 // pred_region
      %s27 = ssub.s32 7168, 7168
      %28 = vsyncadd [#allocation3], %s27
      %s29 = sshll.u32 [#allocation2], 4
      %s30 = int_to_ptr.vmem [resolvable:$true] %s29
      %35 = dma.hbm_to_vmem [thread:$0]  %s2, 7168, %s30, [#allocation3], 64, 64, 4
    $region13: #{tpu_custom_call.1} parent=1 // pred_fallthru
      _
    // Predicated region
    $region14: #{tpu_custom_call.1} parent=1 // pred_check
      _
    $region15: #{tpu_custom_call.1} parent=1 // pred_check_branch
      %37 = sbr.rel (0) target = $region17
    $region16: #{tpu_custom_call.1} parent=1 // pred_region
      _
    $region17: #{tpu_custom_call.1} parent=1 // pred_fallthru
      _
    // Predicated region
    $region18: #{tpu_custom_call.1} parent=1 // pred_check
      _
    $region19: #{tpu_custom_call.1} parent=1 // pred_check_branch
      %39 = sbr.rel (0) target = $region21
    $region20: #{tpu_custom_call.1} parent=1 // pred_region
      _
    $region21: #{tpu_custom_call.1} parent=1 // pred_fallthru
      _
    // Predicated region
    $region22: #{tpu_custom_call.1} parent=1 // pred_check
      _
    $region23: #{tpu_custom_call.1} parent=1 // pred_check_branch
      %41 = sbr.rel (0) target = $region25
    $region24: #{tpu_custom_call.1} parent=1 // pred_region
      %s43 = ssub.s32 4096, 4096
      %44 = vsyncadd [#allocation6], %s43
      %s45 = sshll.u32 [#allocation5], 4
      %s46 = int_to_ptr.vmem [resolvable:$true] %s45
      %51 = dma.hbm_to_vmem [thread:$0]  %s5, 4096, %s46, [#allocation6], 64, 64, 4
    $region25: #{tpu_custom_call.1} parent=1 // pred_fallthru
      _
    // Predicated region
    $region26: #{tpu_custom_call.1} parent=1 // pred_check
      _
    $region27: #{tpu_custom_call.1} parent=1 // pred_check_branch
      %53 = sbr.rel (0) target = $region29
    $region28: #{tpu_custom_call.1} parent=1 // pred_region
      _
    $region29: #{tpu_custom_call.1} parent=1 // pred_fallthru
      _
    // Predicated region
    $region30: #{tpu_custom_call.1} parent=1 // pred_check
      _
    $region31: #{tpu_custom_call.1} parent=1 // pred_check_branch
      %55 = sbr.rel (0) target = $region33
    $region32: #{tpu_custom_call.1} parent=1 // pred_region
      _
    $region33: #{tpu_custom_call.1} parent=1 // pred_fallthru
      _
    // Predicated region
    $region34: #{tpu_custom_call.1} parent=1 // pred_check
      _
    $region35: #{tpu_custom_call.1} parent=1 // pred_check_branch
      %57 = sbr.rel (0) target = $region37
    $region36: #{tpu_custom_call.1} parent=1 // pred_region
      %s59 = ssub.s32 4096, 4096
      %60 = vsyncadd [#allocation6], %s59
      %s61 = sshll.u32 [#allocation7], 4
      %s62 = int_to_ptr.vmem [resolvable:$true] %s61
      %67 = dma.hbm_to_vmem [thread:$0]  %s8, 4096, %s62, [#allocation6], 64, 64, 4
    $region37: #{tpu_custom_call.1} parent=1 // pred_fallthru
      _
    // Predicated region
    $region38: #{tpu_custom_call.1} parent=1 // pred_check
      _
    $region39: #{tpu_custom_call.1} parent=1 // pred_check_branch
      %69 = sbr.rel (0) target = $region41
    $region40: #{tpu_custom_call.1} parent=1 // pred_region
      _
    $region41: #{tpu_custom_call.1} parent=1 // pred_fallthru
      _
    // Predicated region
    $region42: #{tpu_custom_call.1} parent=1 // pred_check
      _
    $region43: #{tpu_custom_call.1} parent=1 // pred_check_branch
      %71 = sbr.rel (0) target = $region45
    $region44: #{tpu_custom_call.1} parent=1 // pred_region
      _
    $region45: #{tpu_custom_call.1} parent=1 // pred_fallthru
      _
    // Predicated region
    $region46: #{tpu_custom_call.1} parent=1 // pred_check
      _
    $region47: #{tpu_custom_call.1} parent=1 // pred_check_branch
      %73 = sbr.rel (0) target = $region49
    $region48: #{tpu_custom_call.1} parent=1 // pred_region
      _
    $region49: #{tpu_custom_call.1} parent=1 // pred_fallthru
      _
    // Predicated region
    $region50: #{tpu_custom_call.1} parent=1 // pred_check
      _
    $region51: #{tpu_custom_call.1} parent=1 // pred_check_branch
      %75 = sbr.rel (0) target = $region53
    $region52: #{tpu_custom_call.1} parent=1 // pred_region
      %76 = dma.done [#allocation3], 7168
    $region53: #{tpu_custom_call.1} parent=1 // pred_fallthru
      _
    // Predicated region
    $region54: #{tpu_custom_call.1} parent=1 // pred_check
      _
    $region55: #{tpu_custom_call.1} parent=1 // pred_check_branch
      %78 = sbr.rel (0) target = $region57
    $region56: #{tpu_custom_call.1} parent=1 // pred_region
      %79 = dma.done [#allocation6], 4096
    $region57: #{tpu_custom_call.1} parent=1 // pred_fallthru
      _
    // Predicated region
    $region58: #{tpu_custom_call.1} parent=1 // pred_check
      _
    $region59: #{tpu_custom_call.1} parent=1 // pred_check_branch
      %81 = sbr.rel (0) target = $region61
    $region60: #{tpu_custom_call.1} parent=1 // pred_region
      %82 = dma.done [#allocation6], 4096
    $region61: #{tpu_custom_call.1} parent=1 // pred_fallthru
      _
    %v84 = vld [vmem:[%s0] sm:$0xff]
    %v85 = vld [vmem:[%s0 + $0x8] sm:$0xff]
    %v86 = vld [vmem:[%s0 + $0x10] sm:$0xff]
    %v87 = vld [vmem:[%s0 + $0x18] sm:$0xff]
    %v88 = vld [vmem:[%s1] sm:$0xf]
    %v89 = vld [vmem:[%s1 + $0x4] sm:$0xf]
    %v90 = vld [vmem:[%s1 + $0x8] sm:$0xf]
    %v91 = vld [vmem:[%s1 + $0xc] sm:$0xf]
    %v92 = vld [vmem:[%s1 + $0x10] sm:$0xf]
    %v93 = vld [vmem:[%s1 + $0x14] sm:$0xf]
    %v94 = vld [vmem:[%s1 + $0x18] sm:$0xf]
    %v95 = vld [vmem:[%s1 + $0x1c] sm:$0xf]
    %v96 = vld [vmem:[%s1 + $0x20] sm:$0xf]
    %v97 = vld [vmem:[%s1 + $0x24] sm:$0xf]
    %v98 = vld [vmem:[%s1 + $0x28] sm:$0xf]
    %v99 = vld [vmem:[%s1 + $0x2c] sm:$0xf]
    %v100 = vld [vmem:[%s1 + $0x30] sm:$0xf]
    %v101 = vld [vmem:[%s1 + $0x34] sm:$0xf]
    %v102 = vld [vmem:[%s1 + $0x38] sm:$0xf]
    %v103 = vld [vmem:[%s1 + $0x3c] sm:$0xf]
    %v104 = vld [vmem:[%s1 + $0x40] sm:$0xf]
    %v105 = vld [vmem:[%s1 + $0x44] sm:$0xf]
    %v106 = vld [vmem:[%s1 + $0x48] sm:$0xf]
    %v107 = vld [vmem:[%s1 + $0x4c] sm:$0xf]
    %v108 = vld [vmem:[%s1 + $0x50] sm:$0xf]
    %v109 = vld [vmem:[%s1 + $0x54] sm:$0xf]
    %v110 = vld [vmem:[%s1 + $0x58] sm:$0xf]
    %v111 = vld [vmem:[%s1 + $0x5c] sm:$0xf]
    %v112 = vld [vmem:[%s1 + $0x60] sm:$0xf]
    %v113 = vld [vmem:[%s1 + $0x64] sm:$0xf]
    %v114 = vld [vmem:[%s1 + $0x68] sm:$0xf]
    %v115 = vld [vmem:[%s1 + $0x6c] sm:$0xf]
    %v116 = vpack.c.bf16 %v85, %v84
    %v117 = vpack.c.bf16 %v87, %v86
    %v146 = vunpack.c.l.b16 %v88
    %v147 = vunpack.c.l.b16 %v89
    %v148 = vunpack.c.l.b16 %v90
    %v149 = vunpack.c.l.b16 %v91
    %v150 = vunpack.c.l.b16 %v92
    %v151 = vunpack.c.l.b16 %v93
    %v152 = vunpack.c.l.b16 %v94
    %v153 = vunpack.c.l.b16 %v95
    %v154 = vunpack.c.l.b16 %v96
    %v155 = vunpack.c.l.b16 %v97
    %v156 = vunpack.c.l.b16 %v98
    %v157 = vunpack.c.l.b16 %v99
    %v158 = vunpack.c.l.b16 %v100
    %v159 = vunpack.c.l.b16 %v101
    %v160 = vunpack.c.l.b16 %v102
    %v161 = vunpack.c.l.b16 %v103
    %v162 = vunpack.c.l.b16 %v104
    %v163 = vunpack.c.l.b16 %v105
    %v164 = vunpack.c.l.b16 %v106
    %v165 = vunpack.c.l.b16 %v107
    %v166 = vunpack.c.l.b16 %v108
    %v167 = vunpack.c.l.b16 %v109
    %v168 = vunpack.c.l.b16 %v110
    %v169 = vunpack.c.l.b16 %v111
    %v170 = vunpack.c.l.b16 %v112
    %v171 = vunpack.c.l.b16 %v113
    %v172 = vunpack.c.l.b16 %v114
    %v173 = vunpack.c.l.b16 %v115
    %v174 = vpack.c.b16 %v147, %v146
    %v175 = vpack.c.b16 %v149, %v148
    %v176 = vpack.c.b16 %v151, %v150
    %v177 = vpack.c.b16 %v153, %v152
    %v178 = vpack.c.b16 %v155, %v154
    %v179 = vpack.c.b16 %v157, %v156
    %v180 = vpack.c.b16 %v159, %v158
    %v181 = vpack.c.b16 %v161, %v160
    %v182 = vpack.c.b16 %v163, %v162
    %v183 = vpack.c.b16 %v165, %v164
    %v184 = vpack.c.b16 %v167, %v166
    %v185 = vpack.c.b16 %v169, %v168
    %v186 = vpack.c.b16 %v171, %v170
    %v187 = vpack.c.b16 %v173, %v172
    %vm188 = vcmask 261120
    %v190 = vsel %vm188, %v174, 0
    %v193 = vsel %vm188, %v175, 0
    %v196 = vsel %vm188, %v176, 0
    %v199 = vsel %vm188, %v177, 0
    %v202 = vsel %vm188, %v178, 0
    %v205 = vsel %vm188, %v179, 0
    %v208 = vsel %vm188, %v180, 0
    %v211 = vsel %vm188, %v181, 0
    %v214 = vsel %vm188, %v182, 0
    %v217 = vsel %vm188, %v183, 0
    %v220 = vsel %vm188, %v184, 0
    %v223 = vsel %vm188, %v185, 0
    %v226 = vsel %vm188, %v186, 0
    %v229 = vsel %vm188, %v187, 0
    %231 = vmatprep.subr.bf16.mxu0 0
    %232 = vmatpush1.bf16.msra.mxu0 0
    %233 = vmatprep.subr.bf16.mxu0 0
    %234 = vmatpush1.bf16.msra.mxu0 0
    %235 = vmatprep.subr.bf16.mxu0 0
    %236 = vmatpush1.bf16.msra.mxu0 0
    %237 = vmatprep.subr.bf16.mxu0 0
    %238 = vmatpush1.bf16.msra.mxu0 0
    %239 = vmatprep.subr.bf16.mxu0 0
    %240 = vmatpush1.bf16.msra.mxu0 0
    %241 = vmatprep.subr.bf16.mxu0 0
    %242 = vmatpush1.bf16.msra.mxu0 0
    %243 = vmatprep.subr.bf16.mxu0 0
    %244 = vmatpush1.bf16.msra.mxu0 %v117
    %245 = vmatprep.subr.bf16.mxu0 0
    %246 = vmatpush1.bf16.msra.mxu0 %v116
    %247 = vmatprep.subr.bf16.mxu0 0
    %248 = vmatpush2.bf16.msra.mxu0 0
    %249 = vmatprep.subr.bf16.mxu0 0
    %250 = vmatpush2.bf16.msra.mxu0 0
    %251 = vmatprep.subr.bf16.mxu0 0
    %252 = vmatpush2.bf16.msra.mxu0 0
    %253 = vmatprep.subr.bf16.mxu0 0
    %254 = vmatpush2.bf16.msra.mxu0 0
    %255 = vmatprep.subr.bf16.mxu0 0
    %256 = vmatpush2.bf16.msra.mxu0 0
    %257 = vmatprep.subr.bf16.mxu0 0
    %258 = vmatpush2.bf16.msra.mxu0 0
    %259 = vmatprep.subr.bf16.mxu0 0
    %260 = vmatpush2.bf16.msra.mxu0 0
    %261 = vmatprep.subr.bf16.mxu0 0
    %262 = vmatpush2.bf16.msra.mxu0 0
    %263 = vmatprep.mubr.bf16.mxu0 0
    %264 = vmatmul.mubr.bf16.gmra.mxu0 %v190
    %v265 = vpop.f32.mrf.mxu0
    %v266 = vadd.f32 0.0, %v265
    %v267 = vpop.f32.mrf.mxu0
    %v268 = vpop.f32.mrf.mxu0
    %v269 = vadd.f32 0.0, %v268
    %v270 = vpop.f32.mrf.mxu0
    %271 = vmatprep.mubr.bf16.mxu0 0
    %272 = vmatmul.mubr.bf16.gmra.mxu0 %v193
    %v273 = vpop.f32.mrf.mxu0
    %v274 = vadd.f32 0.0, %v273
    %v275 = vpop.f32.mrf.mxu0
    %v276 = vpop.f32.mrf.mxu0
    %v277 = vadd.f32 0.0, %v276
    %v278 = vpop.f32.mrf.mxu0
    %279 = vmatprep.mubr.bf16.mxu0 0
    %280 = vmatmul.mubr.bf16.gmra.mxu0 %v196
    %v281 = vpop.f32.mrf.mxu0
    %v282 = vadd.f32 0.0, %v281
    %v283 = vpop.f32.mrf.mxu0
    %v284 = vpop.f32.mrf.mxu0
    %v285 = vadd.f32 0.0, %v284
    %v286 = vpop.f32.mrf.mxu0
    %287 = vmatprep.mubr.bf16.mxu0 0
    %288 = vmatmul.mubr.bf16.gmra.mxu0 %v199
    %v289 = vpop.f32.mrf.mxu0
    %v290 = vadd.f32 0.0, %v289
    %v291 = vpop.f32.mrf.mxu0
    %v292 = vpop.f32.mrf.mxu0
    %v293 = vadd.f32 0.0, %v292
    %v294 = vpop.f32.mrf.mxu0
    %295 = vmatprep.mubr.bf16.mxu0 0
    %296 = vmatmul.mubr.bf16.gmra.mxu0 %v202
    %v297 = vpop.f32.mrf.mxu0
    %v298 = vadd.f32 0.0, %v297
    %v299 = vpop.f32.mrf.mxu0
    %v300 = vpop.f32.mrf.mxu0
    %v301 = vadd.f32 0.0, %v300
    %v302 = vpop.f32.mrf.mxu0
    %303 = vmatprep.mubr.bf16.mxu0 0
    %304 = vmatmul.mubr.bf16.gmra.mxu0 %v205
    %v305 = vpop.f32.mrf.mxu0
    %v306 = vadd.f32 0.0, %v305
    %v307 = vpop.f32.mrf.mxu0
    %v308 = vpop.f32.mrf.mxu0
    %v309 = vadd.f32 0.0, %v308
    %v310 = vpop.f32.mrf.mxu0
    %311 = vmatprep.mubr.bf16.mxu0 0
    %312 = vmatmul.mubr.bf16.gmra.mxu0 %v208
    %v313 = vpop.f32.mrf.mxu0
    %v314 = vadd.f32 0.0, %v313
    %v315 = vpop.f32.mrf.mxu0
    %v316 = vpop.f32.mrf.mxu0
    %v317 = vadd.f32 0.0, %v316
    %v318 = vpop.f32.mrf.mxu0
    %319 = vmatprep.mubr.bf16.mxu0 0
    %320 = vmatmul.mubr.bf16.gmra.mxu0 %v211
    %v321 = vpop.f32.mrf.mxu0
    %v322 = vadd.f32 0.0, %v321
    %v323 = vpop.f32.mrf.mxu0
    %v324 = vpop.f32.mrf.mxu0
    %v325 = vadd.f32 0.0, %v324
    %v326 = vpop.f32.mrf.mxu0
    %327 = vmatprep.mubr.bf16.mxu0 0
    %328 = vmatmul.mubr.bf16.gmra.mxu0 %v214
    %v329 = vpop.f32.mrf.mxu0
    %v330 = vadd.f32 0.0, %v329
    %v331 = vpop.f32.mrf.mxu0
    %v332 = vpop.f32.mrf.mxu0
    %v333 = vadd.f32 0.0, %v332
    %v334 = vpop.f32.mrf.mxu0
    %335 = vmatprep.mubr.bf16.mxu0 0
    %336 = vmatmul.mubr.bf16.gmra.mxu0 %v217
    %v337 = vpop.f32.mrf.mxu0
    %v338 = vadd.f32 0.0, %v337
    %v339 = vpop.f32.mrf.mxu0
    %v340 = vpop.f32.mrf.mxu0
    %v341 = vadd.f32 0.0, %v340
    %v342 = vpop.f32.mrf.mxu0
    %343 = vmatprep.mubr.bf16.mxu0 0
    %344 = vmatmul.mubr.bf16.gmra.mxu0 %v220
    %v345 = vpop.f32.mrf.mxu0
    %v346 = vadd.f32 0.0, %v345
    %v347 = vpop.f32.mrf.mxu0
    %v348 = vpop.f32.mrf.mxu0
    %v349 = vadd.f32 0.0, %v348
    %v350 = vpop.f32.mrf.mxu0
    %351 = vmatprep.mubr.bf16.mxu0 0
    %352 = vmatmul.mubr.bf16.gmra.mxu0 %v223
    %v353 = vpop.f32.mrf.mxu0
    %v354 = vadd.f32 0.0, %v353
    %v355 = vpop.f32.mrf.mxu0
    %v356 = vpop.f32.mrf.mxu0
    %v357 = vadd.f32 0.0, %v356
    %v358 = vpop.f32.mrf.mxu0
    %359 = vmatprep.mubr.bf16.mxu0 0
    %360 = vmatmul.mubr.bf16.gmra.mxu0 %v226
    %v361 = vpop.f32.mrf.mxu0
    %v362 = vadd.f32 0.0, %v361
    %v363 = vpop.f32.mrf.mxu0
    %v364 = vpop.f32.mrf.mxu0
    %v365 = vadd.f32 0.0, %v364
    %v366 = vpop.f32.mrf.mxu0
    %367 = vmatprep.mubr.bf16.mxu0 0
    %368 = vmatmul.mubr.bf16.gmra.mxu0 %v229
    %v369 = vpop.f32.mrf.mxu0
    %v370 = vadd.f32 0.0, %v369
    %v371 = vpop.f32.mrf.mxu0
    %v372 = vpop.f32.mrf.mxu0
    %v373 = vadd.f32 0.0, %v372
    %v374 = vpop.f32.mrf.mxu0
    %375 = vdwg.mxu0
    %v376 = vpack.c.bf16 %v269, %v266
    %v377 = vpack.c.bf16 %v277, %v274
    %v378 = vpack.c.bf16 %v285, %v282
    %v379 = vpack.c.bf16 %v293, %v290
    %v380 = vpack.c.bf16 %v301, %v298
    %v381 = vpack.c.bf16 %v309, %v306
    %v382 = vpack.c.bf16 %v317, %v314
    %v383 = vpack.c.bf16 %v325, %v322
    %v384 = vpack.c.bf16 %v333, %v330
    %v385 = vpack.c.bf16 %v341, %v338
    %v386 = vpack.c.bf16 %v349, %v346
    %v387 = vpack.c.bf16 %v357, %v354
    %v388 = vpack.c.bf16 %v365, %v362
    %v389 = vpack.c.bf16 %v373, %v370
    %v390 = vld [vmem:[#allocation2] sm:$0xf]
    %v391 = vld [vmem:[#allocation2 + $0x4] sm:$0xf]
    %v392 = vld [vmem:[#allocation2 + $0x8] sm:$0xf]
    %v393 = vld [vmem:[#allocation2 + $0xc] sm:$0xf]
    %v394 = vld [vmem:[#allocation2 + $0x10] sm:$0xf]
    %v395 = vld [vmem:[#allocation2 + $0x14] sm:$0xf]
    %v396 = vld [vmem:[#allocation2 + $0x18] sm:$0xf]
    %v397 = vld [vmem:[#allocation2 + $0x1c] sm:$0xf]
    %v398 = vld [vmem:[#allocation2 + $0x20] sm:$0xf]
    %v399 = vld [vmem:[#allocation2 + $0x24] sm:$0xf]
    %v400 = vld [vmem:[#allocation2 + $0x28] sm:$0xf]
    %v401 = vld [vmem:[#allocation2 + $0x2c] sm:$0xf]
    %v402 = vld [vmem:[#allocation2 + $0x30] sm:$0xf]
    %v403 = vld [vmem:[#allocation2 + $0x34] sm:$0xf]
    %v404 = vld [vmem:[#allocation2 + $0x38] sm:$0xf]
    %v405 = vld [vmem:[#allocation2 + $0x3c] sm:$0xf]
    %s406 = scalar_lea.vmem [#allocation2], 64
    %v407 = vld [vmem:[%s406] sm:$0xf]
    %v408 = vld [vmem:[%s406 + $0x4] sm:$0xf]
    %v409 = vld [vmem:[%s406 + $0x8] sm:$0xf]
    %v410 = vld [vmem:[%s406 + $0xc] sm:$0xf]
    %v411 = vld [vmem:[%s406 + $0x10] sm:$0xf]
    %v412 = vld [vmem:[%s406 + $0x14] sm:$0xf]
    %v413 = vld [vmem:[%s406 + $0x18] sm:$0xf]
    %v414 = vld [vmem:[%s406 + $0x1c] sm:$0xf]
    %v415 = vld [vmem:[%s406 + $0x20] sm:$0xf]
    %v416 = vld [vmem:[%s406 + $0x24] sm:$0xf]
    %v417 = vld [vmem:[%s406 + $0x28] sm:$0xf]
    %v418 = vld [vmem:[%s406 + $0x2c] sm:$0xf]
    %v419 = vld [vmem:[%s406 + $0x30] sm:$0xf]
    %v420 = vld [vmem:[%s406 + $0x34] sm:$0xf]
    %v421 = vld [vmem:[%s406 + $0x38] sm:$0xf]
    %v422 = vld [vmem:[%s406 + $0x3c] sm:$0xf]
    %v439 = vunpack.c.l.b16 %v407
    %v440 = vunpack.c.l.b16 %v408
    %v441 = vunpack.c.l.b16 %v409
    %v442 = vunpack.c.l.b16 %v410
    %v443 = vunpack.c.l.b16 %v411
    %v444 = vunpack.c.l.b16 %v412
    %v445 = vunpack.c.l.b16 %v413
    %v446 = vunpack.c.l.b16 %v414
    %v447 = vunpack.c.l.b16 %v415
    %v448 = vunpack.c.l.b16 %v416
    %v449 = vunpack.c.l.b16 %v417
    %v450 = vunpack.c.l.b16 %v418
    %v451 = vunpack.c.l.b16 %v419
    %v452 = vunpack.c.l.b16 %v420
    %v453 = vunpack.c.l.b16 %v421
    %v454 = vunpack.c.l.b16 %v422
    %v455 = vpack.c.b16 %v440, %v439
    %v456 = vpack.c.b16 %v442, %v441
    %v457 = vpack.c.b16 %v444, %v443
    %v458 = vpack.c.b16 %v446, %v445
    %v459 = vpack.c.b16 %v448, %v447
    %v460 = vpack.c.b16 %v450, %v449
    %v461 = vpack.c.b16 %v452, %v451
    %v462 = vpack.c.b16 %v454, %v453
    %471 = vmatprep.subr.bf16.mxu0 0
    %472 = vmatpush1.bf16.msra.mxu0 %v462
    %473 = vmatprep.subr.bf16.mxu0 0
    %474 = vmatpush1.bf16.msra.mxu0 %v461
    %475 = vmatprep.subr.bf16.mxu0 0
    %476 = vmatpush1.bf16.msra.mxu0 %v460
    %477 = vmatprep.subr.bf16.mxu0 0
    %478 = vmatpush1.bf16.msra.mxu0 %v459
    %479 = vmatprep.subr.bf16.mxu0 0
    %480 = vmatpush1.bf16.msra.mxu0 %v458
    %481 = vmatprep.subr.bf16.mxu0 0
    %482 = vmatpush1.bf16.msra.mxu0 %v457
    %483 = vmatprep.subr.bf16.mxu0 0
    %484 = vmatpush1.bf16.msra.mxu0 %v456
    %485 = vmatprep.subr.bf16.mxu0 0
    %486 = vmatpush1.bf16.msra.mxu0 %v455
    %487 = vmatprep.subr.bf16.mxu0 0
    %488 = vmatpush2.bf16.msra.mxu0 0
    %489 = vmatprep.subr.bf16.mxu0 0
    %490 = vmatpush2.bf16.msra.mxu0 0
    %491 = vmatprep.subr.bf16.mxu0 0
    %492 = vmatpush2.bf16.msra.mxu0 0
    %493 = vmatprep.subr.bf16.mxu0 0
    %494 = vmatpush2.bf16.msra.mxu0 0
    %495 = vmatprep.subr.bf16.mxu0 0
    %496 = vmatpush2.bf16.msra.mxu0 0
    %497 = vmatprep.subr.bf16.mxu0 0
    %498 = vmatpush2.bf16.msra.mxu0 0
    %499 = vmatprep.subr.bf16.mxu0 0
    %500 = vmatpush2.bf16.msra.mxu0 0
    %501 = vmatprep.subr.bf16.mxu0 0
    %502 = vmatpush2.bf16.msra.mxu0 0
    %503 = vmatprep.mubr.bf16.mxu0 0
    %504 = vmatmul.mubr.bf16.gmra.mxu0 %v378
    %v505 = vpop.f32.mrf.mxu0
    %v506 = vadd.f32 0.0, %v505
    %v507 = vpop.f32.mrf.mxu0
    %v508 = vpop.f32.mrf.mxu0
    %v509 = vadd.f32 0.0, %v508
    %v510 = vpop.f32.mrf.mxu0
    %511 = vmatprep.mubr.bf16.mxu0 0
    %512 = vmatmul.mubr.bf16.gmra.mxu0 %v379
    %v513 = vpop.f32.mrf.mxu0
    %v514 = vadd.f32 0.0, %v513
    %v515 = vpop.f32.mrf.mxu0
    %v516 = vpop.f32.mrf.mxu0
    %v517 = vadd.f32 0.0, %v516
    %v518 = vpop.f32.mrf.mxu0
    %519 = vdwg.mxu0
    %v536 = vunpack.c.l.b16 %v390
    %v537 = vunpack.c.l.b16 %v391
    %v538 = vunpack.c.l.b16 %v392
    %v539 = vunpack.c.l.b16 %v393
    %v540 = vunpack.c.l.b16 %v394
    %v541 = vunpack.c.l.b16 %v395
    %v542 = vunpack.c.l.b16 %v396
    %v543 = vunpack.c.l.b16 %v397
    %v544 = vunpack.c.l.b16 %v398
    %v545 = vunpack.c.l.b16 %v399
    %v546 = vunpack.c.l.b16 %v400
    %v547 = vunpack.c.l.b16 %v401
    %v548 = vunpack.c.l.b16 %v402
    %v549 = vunpack.c.l.b16 %v403
    %v550 = vunpack.c.l.b16 %v404
    %v551 = vunpack.c.l.b16 %v405
    %v552 = vpack.c.b16 %v537, %v536
    %v553 = vpack.c.b16 %v539, %v538
    %v554 = vpack.c.b16 %v541, %v540
    %v555 = vpack.c.b16 %v543, %v542
    %v556 = vpack.c.b16 %v545, %v544
    %v557 = vpack.c.b16 %v547, %v546
    %v558 = vpack.c.b16 %v549, %v548
    %v559 = vpack.c.b16 %v551, %v550
    %568 = vmatprep.subr.bf16.mxu0 0
    %569 = vmatpush1.bf16.msra.mxu0 %v559
    %570 = vmatprep.subr.bf16.mxu0 0
    %571 = vmatpush1.bf16.msra.mxu0 %v558
    %572 = vmatprep.subr.bf16.mxu0 0
    %573 = vmatpush1.bf16.msra.mxu0 %v557
    %574 = vmatprep.subr.bf16.mxu0 0
    %575 = vmatpush1.bf16.msra.mxu0 %v556
    %576 = vmatprep.subr.bf16.mxu0 0
    %577 = vmatpush1.bf16.msra.mxu0 %v555
    %578 = vmatprep.subr.bf16.mxu0 0
    %579 = vmatpush1.bf16.msra.mxu0 %v554
    %580 = vmatprep.subr.bf16.mxu0 0
    %581 = vmatpush1.bf16.msra.mxu0 %v553
    %582 = vmatprep.subr.bf16.mxu0 0
    %583 = vmatpush1.bf16.msra.mxu0 %v552
    %584 = vmatprep.subr.bf16.mxu0 0
    %585 = vmatpush2.bf16.msra.mxu0 0
    %586 = vmatprep.subr.bf16.mxu0 0
    %587 = vmatpush2.bf16.msra.mxu0 0
    %588 = vmatprep.subr.bf16.mxu0 0
    %589 = vmatpush2.bf16.msra.mxu0 0
    %590 = vmatprep.subr.bf16.mxu0 0
    %591 = vmatpush2.bf16.msra.mxu0 0
    %592 = vmatprep.subr.bf16.mxu0 0
    %593 = vmatpush2.bf16.msra.mxu0 0
    %594 = vmatprep.subr.bf16.mxu0 0
    %595 = vmatpush2.bf16.msra.mxu0 0
    %596 = vmatprep.subr.bf16.mxu0 0
    %597 = vmatpush2.bf16.msra.mxu0 0
    %598 = vmatprep.subr.bf16.mxu0 0
    %599 = vmatpush2.bf16.msra.mxu0 0
    %600 = vmatprep.mubr.bf16.mxu0 0
    %601 = vmatmul.mubr.bf16.gmra.mxu0 %v376
    %v602 = vpop.f32.mrf.mxu0
    %v603 = vadd.f32 %v506, %v602
    %v604 = vpop.f32.mrf.mxu0
    %v605 = vpop.f32.mrf.mxu0
    %v606 = vadd.f32 %v509, %v605
    %v607 = vpop.f32.mrf.mxu0
    %608 = vmatprep.mubr.bf16.mxu0 0
    %609 = vmatmul.mubr.bf16.gmra.mxu0 %v377
    %v610 = vpop.f32.mrf.mxu0
    %v611 = vadd.f32 %v514, %v610
    %v612 = vpop.f32.mrf.mxu0
    %v613 = vpop.f32.mrf.mxu0
    %v614 = vadd.f32 %v517, %v613
    %v615 = vpop.f32.mrf.mxu0
    %616 = vdwg.mxu0
    %s617 = scalar_lea.vmem [#allocation2], 128
    %v618 = vld [vmem:[%s617] sm:$0xf]
    %v619 = vld [vmem:[%s617 + $0x4] sm:$0xf]
    %v620 = vld [vmem:[%s617 + $0x8] sm:$0xf]
    %v621 = vld [vmem:[%s617 + $0xc] sm:$0xf]
    %v622 = vld [vmem:[%s617 + $0x10] sm:$0xf]
    %v623 = vld [vmem:[%s617 + $0x14] sm:$0xf]
    %v624 = vld [vmem:[%s617 + $0x18] sm:$0xf]
    %v625 = vld [vmem:[%s617 + $0x1c] sm:$0xf]
    %v626 = vld [vmem:[%s617 + $0x20] sm:$0xf]
    %v627 = vld [vmem:[%s617 + $0x24] sm:$0xf]
    %v628 = vld [vmem:[%s617 + $0x28] sm:$0xf]
    %v629 = vld [vmem:[%s617 + $0x2c] sm:$0xf]
    %v630 = vld [vmem:[%s617 + $0x30] sm:$0xf]
    %v631 = vld [vmem:[%s617 + $0x34] sm:$0xf]
    %v632 = vld [vmem:[%s617 + $0x38] sm:$0xf]
    %v633 = vld [vmem:[%s617 + $0x3c] sm:$0xf]
    %v650 = vunpack.c.l.b16 %v618
    %v651 = vunpack.c.l.b16 %v619
    %v652 = vunpack.c.l.b16 %v620
    %v653 = vunpack.c.l.b16 %v621
    %v654 = vunpack.c.l.b16 %v622
    %v655 = vunpack.c.l.b16 %v623
    %v656 = vunpack.c.l.b16 %v624
    %v657 = vunpack.c.l.b16 %v625
    %v658 = vunpack.c.l.b16 %v626
    %v659 = vunpack.c.l.b16 %v627
    %v660 = vunpack.c.l.b16 %v628
    %v661 = vunpack.c.l.b16 %v629
    %v662 = vunpack.c.l.b16 %v630
    %v663 = vunpack.c.l.b16 %v631
    %v664 = vunpack.c.l.b16 %v632
    %v665 = vunpack.c.l.b16 %v633
    %v666 = vpack.c.b16 %v651, %v650
    %v667 = vpack.c.b16 %v653, %v652
    %v668 = vpack.c.b16 %v655, %v654
    %v669 = vpack.c.b16 %v657, %v656
    %v670 = vpack.c.b16 %v659, %v658
    %v671 = vpack.c.b16 %v661, %v660
    %v672 = vpack.c.b16 %v663, %v662
    %v673 = vpack.c.b16 %v665, %v664
    %682 = vmatprep.subr.bf16.mxu0 0
    %683 = vmatpush1.bf16.msra.mxu0 %v673
    %684 = vmatprep.subr.bf16.mxu0 0
    %685 = vmatpush1.bf16.msra.mxu0 %v672
    %686 = vmatprep.subr.bf16.mxu0 0
    %687 = vmatpush1.bf16.msra.mxu0 %v671
    %688 = vmatprep.subr.bf16.mxu0 0
    %689 = vmatpush1.bf16.msra.mxu0 %v670
    %690 = vmatprep.subr.bf16.mxu0 0
    %691 = vmatpush1.bf16.msra.mxu0 %v669
    %692 = vmatprep.subr.bf16.mxu0 0
    %693 = vmatpush1.bf16.msra.mxu0 %v668
    %694 = vmatprep.subr.bf16.mxu0 0
    %695 = vmatpush1.bf16.msra.mxu0 %v667
    %696 = vmatprep.subr.bf16.mxu0 0
    %697 = vmatpush1.bf16.msra.mxu0 %v666
    %698 = vmatprep.subr.bf16.mxu0 0
    %699 = vmatpush2.bf16.msra.mxu0 0
    %700 = vmatprep.subr.bf16.mxu0 0
    %701 = vmatpush2.bf16.msra.mxu0 0
    %702 = vmatprep.subr.bf16.mxu0 0
    %703 = vmatpush2.bf16.msra.mxu0 0
    %704 = vmatprep.subr.bf16.mxu0 0
    %705 = vmatpush2.bf16.msra.mxu0 0
    %706 = vmatprep.subr.bf16.mxu0 0
    %707 = vmatpush2.bf16.msra.mxu0 0
    %708 = vmatprep.subr.bf16.mxu0 0
    %709 = vmatpush2.bf16.msra.mxu0 0
    %710 = vmatprep.subr.bf16.mxu0 0
    %711 = vmatpush2.bf16.msra.mxu0 0
    %712 = vmatprep.subr.bf16.mxu0 0
    %713 = vmatpush2.bf16.msra.mxu0 0
    %714 = vmatprep.mubr.bf16.mxu0 0
    %715 = vmatmul.mubr.bf16.gmra.mxu0 %v380
    %v716 = vpop.f32.mrf.mxu0
    %v717 = vadd.f32 0.0, %v716
    %v718 = vpop.f32.mrf.mxu0
    %v719 = vpop.f32.mrf.mxu0
    %v720 = vadd.f32 0.0, %v719
    %v721 = vpop.f32.mrf.mxu0
    %722 = vmatprep.mubr.bf16.mxu0 0
    %723 = vmatmul.mubr.bf16.gmra.mxu0 %v381
    %v724 = vpop.f32.mrf.mxu0
    %v725 = vadd.f32 0.0, %v724
    %v726 = vpop.f32.mrf.mxu0
    %v727 = vpop.f32.mrf.mxu0
    %v728 = vadd.f32 0.0, %v727
    %v729 = vpop.f32.mrf.mxu0
    %730 = vdwg.mxu0
    %v731 = vadd.f32 %v603, %v717
    %v732 = vadd.f32 %v606, %v720
    %v733 = vadd.f32 %v611, %v725
    %v734 = vadd.f32 %v614, %v728
    %s735 = scalar_lea.vmem [#allocation2], 192
    %v736 = vld [vmem:[%s735] sm:$0xf]
    %v737 = vld [vmem:[%s735 + $0x4] sm:$0xf]
    %v738 = vld [vmem:[%s735 + $0x8] sm:$0xf]
    %v739 = vld [vmem:[%s735 + $0xc] sm:$0xf]
    %v740 = vld [vmem:[%s735 + $0x10] sm:$0xf]
    %v741 = vld [vmem:[%s735 + $0x14] sm:$0xf]
    %v742 = vld [vmem:[%s735 + $0x18] sm:$0xf]
    %v743 = vld [vmem:[%s735 + $0x1c] sm:$0xf]
    %v744 = vld [vmem:[%s735 + $0x20] sm:$0xf]
    %v745 = vld [vmem:[%s735 + $0x24] sm:$0xf]
    %v746 = vld [vmem:[%s735 + $0x28] sm:$0xf]
    %v747 = vld [vmem:[%s735 + $0x2c] sm:$0xf]
    %v748 = vld [vmem:[%s735 + $0x30] sm:$0xf]
    %v749 = vld [vmem:[%s735 + $0x34] sm:$0xf]
    %v750 = vld [vmem:[%s735 + $0x38] sm:$0xf]
    %v751 = vld [vmem:[%s735 + $0x3c] sm:$0xf]
    %v768 = vunpack.c.l.b16 %v736
    %v769 = vunpack.c.l.b16 %v737
    %v770 = vunpack.c.l.b16 %v738
    %v771 = vunpack.c.l.b16 %v739
    %v772 = vunpack.c.l.b16 %v740
    %v773 = vunpack.c.l.b16 %v741
    %v774 = vunpack.c.l.b16 %v742
    %v775 = vunpack.c.l.b16 %v743
    %v776 = vunpack.c.l.b16 %v744
    %v777 = vunpack.c.l.b16 %v745
    %v778 = vunpack.c.l.b16 %v746
    %v779 = vunpack.c.l.b16 %v747
    %v780 = vunpack.c.l.b16 %v748
    %v781 = vunpack.c.l.b16 %v749
    %v782 = vunpack.c.l.b16 %v750
    %v783 = vunpack.c.l.b16 %v751
    %v784 = vpack.c.b16 %v769, %v768
    %v785 = vpack.c.b16 %v771, %v770
    %v786 = vpack.c.b16 %v773, %v772
    %v787 = vpack.c.b16 %v775, %v774
    %v788 = vpack.c.b16 %v777, %v776
    %v789 = vpack.c.b16 %v779, %v778
    %v790 = vpack.c.b16 %v781, %v780
    %v791 = vpack.c.b16 %v783, %v782
    %800 = vmatprep.subr.bf16.mxu0 0
    %801 = vmatpush1.bf16.msra.mxu0 %v791
    %802 = vmatprep.subr.bf16.mxu0 0
    %803 = vmatpush1.bf16.msra.mxu0 %v790
    %804 = vmatprep.subr.bf16.mxu0 0
    %805 = vmatpush1.bf16.msra.mxu0 %v789
    %806 = vmatprep.subr.bf16.mxu0 0
    %807 = vmatpush1.bf16.msra.mxu0 %v788
    %808 = vmatprep.subr.bf16.mxu0 0
    %809 = vmatpush1.bf16.msra.mxu0 %v787
    %810 = vmatprep.subr.bf16.mxu0 0
    %811 = vmatpush1.bf16.msra.mxu0 %v786
    %812 = vmatprep.subr.bf16.mxu0 0
    %813 = vmatpush1.bf16.msra.mxu0 %v785
    %814 = vmatprep.subr.bf16.mxu0 0
    %815 = vmatpush1.bf16.msra.mxu0 %v784
    %816 = vmatprep.subr.bf16.mxu0 0
    %817 = vmatpush2.bf16.msra.mxu0 0
    %818 = vmatprep.subr.bf16.mxu0 0
    %819 = vmatpush2.bf16.msra.mxu0 0
    %820 = vmatprep.subr.bf16.mxu0 0
    %821 = vmatpush2.bf16.msra.mxu0 0
    %822 = vmatprep.subr.bf16.mxu0 0
    %823 = vmatpush2.bf16.msra.mxu0 0
    %824 = vmatprep.subr.bf16.mxu0 0
    %825 = vmatpush2.bf16.msra.mxu0 0
    %826 = vmatprep.subr.bf16.mxu0 0
    %827 = vmatpush2.bf16.msra.mxu0 0
    %828 = vmatprep.subr.bf16.mxu0 0
    %829 = vmatpush2.bf16.msra.mxu0 0
    %830 = vmatprep.subr.bf16.mxu0 0
    %831 = vmatpush2.bf16.msra.mxu0 0
    %832 = vmatprep.mubr.bf16.mxu0 0
    %833 = vmatmul.mubr.bf16.gmra.mxu0 %v382
    %v834 = vpop.f32.mrf.mxu0
    %v835 = vadd.f32 0.0, %v834
    %v836 = vpop.f32.mrf.mxu0
    %v837 = vpop.f32.mrf.mxu0
    %v838 = vadd.f32 0.0, %v837
    %v839 = vpop.f32.mrf.mxu0
    %840 = vmatprep.mubr.bf16.mxu0 0
    %841 = vmatmul.mubr.bf16.gmra.mxu0 %v383
    %v842 = vpop.f32.mrf.mxu0
    %v843 = vadd.f32 0.0, %v842
    %v844 = vpop.f32.mrf.mxu0
    %v845 = vpop.f32.mrf.mxu0
    %v846 = vadd.f32 0.0, %v845
    %v847 = vpop.f32.mrf.mxu0
    %848 = vdwg.mxu0
    %v849 = vadd.f32 %v731, %v835
    %v850 = vadd.f32 %v732, %v838
    %v851 = vadd.f32 %v733, %v843
    %v852 = vadd.f32 %v734, %v846
    %s853 = scalar_lea.vmem [#allocation2], 256
    %v854 = vld [vmem:[%s853] sm:$0xf]
    %v855 = vld [vmem:[%s853 + $0x4] sm:$0xf]
    %v856 = vld [vmem:[%s853 + $0x8] sm:$0xf]
    %v857 = vld [vmem:[%s853 + $0xc] sm:$0xf]
    %v858 = vld [vmem:[%s853 + $0x10] sm:$0xf]
    %v859 = vld [vmem:[%s853 + $0x14] sm:$0xf]
    %v860 = vld [vmem:[%s853 + $0x18] sm:$0xf]
    %v861 = vld [vmem:[%s853 + $0x1c] sm:$0xf]
    %v862 = vld [vmem:[%s853 + $0x20] sm:$0xf]
    %v863 = vld [vmem:[%s853 + $0x24] sm:$0xf]
    %v864 = vld [vmem:[%s853 + $0x28] sm:$0xf]
    %v865 = vld [vmem:[%s853 + $0x2c] sm:$0xf]
    %v866 = vld [vmem:[%s853 + $0x30] sm:$0xf]
    %v867 = vld [vmem:[%s853 + $0x34] sm:$0xf]
    %v868 = vld [vmem:[%s853 + $0x38] sm:$0xf]
    %v869 = vld [vmem:[%s853 + $0x3c] sm:$0xf]
    %v886 = vunpack.c.l.b16 %v854
    %v887 = vunpack.c.l.b16 %v855
    %v888 = vunpack.c.l.b16 %v856
    %v889 = vunpack.c.l.b16 %v857
    %v890 = vunpack.c.l.b16 %v858
    %v891 = vunpack.c.l.b16 %v859
    %v892 = vunpack.c.l.b16 %v860
    %v893 = vunpack.c.l.b16 %v861
    %v894 = vunpack.c.l.b16 %v862
    %v895 = vunpack.c.l.b16 %v863
    %v896 = vunpack.c.l.b16 %v864
    %v897 = vunpack.c.l.b16 %v865
    %v898 = vunpack.c.l.b16 %v866
    %v899 = vunpack.c.l.b16 %v867
    %v900 = vunpack.c.l.b16 %v868
    %v901 = vunpack.c.l.b16 %v869
    %v902 = vpack.c.b16 %v887, %v886
    %v903 = vpack.c.b16 %v889, %v888
    %v904 = vpack.c.b16 %v891, %v890
    %v905 = vpack.c.b16 %v893, %v892
    %v906 = vpack.c.b16 %v895, %v894
    %v907 = vpack.c.b16 %v897, %v896
    %v908 = vpack.c.b16 %v899, %v898
    %v909 = vpack.c.b16 %v901, %v900
    %918 = vmatprep.subr.bf16.mxu0 0
    %919 = vmatpush1.bf16.msra.mxu0 %v909
    %920 = vmatprep.subr.bf16.mxu0 0
    %921 = vmatpush1.bf16.msra.mxu0 %v908
    %922 = vmatprep.subr.bf16.mxu0 0
    %923 = vmatpush1.bf16.msra.mxu0 %v907
    %924 = vmatprep.subr.bf16.mxu0 0
    %925 = vmatpush1.bf16.msra.mxu0 %v906
    %926 = vmatprep.subr.bf16.mxu0 0
    %927 = vmatpush1.bf16.msra.mxu0 %v905
    %928 = vmatprep.subr.bf16.mxu0 0
    %929 = vmatpush1.bf16.msra.mxu0 %v904
    %930 = vmatprep.subr.bf16.mxu0 0
    %931 = vmatpush1.bf16.msra.mxu0 %v903
    %932 = vmatprep.subr.bf16.mxu0 0
    %933 = vmatpush1.bf16.msra.mxu0 %v902
    %934 = vmatprep.subr.bf16.mxu0 0
    %935 = vmatpush2.bf16.msra.mxu0 0
    %936 = vmatprep.subr.bf16.mxu0 0
    %937 = vmatpush2.bf16.msra.mxu0 0
    %938 = vmatprep.subr.bf16.mxu0 0
    %939 = vmatpush2.bf16.msra.mxu0 0
    %940 = vmatprep.subr.bf16.mxu0 0
    %941 = vmatpush2.bf16.msra.mxu0 0
    %942 = vmatprep.subr.bf16.mxu0 0
    %943 = vmatpush2.bf16.msra.mxu0 0
    %944 = vmatprep.subr.bf16.mxu0 0
    %945 = vmatpush2.bf16.msra.mxu0 0
    %946 = vmatprep.subr.bf16.mxu0 0
    %947 = vmatpush2.bf16.msra.mxu0 0
    %948 = vmatprep.subr.bf16.mxu0 0
    %949 = vmatpush2.bf16.msra.mxu0 0
    %950 = vmatprep.mubr.bf16.mxu0 0
    %951 = vmatmul.mubr.bf16.gmra.mxu0 %v384
    %v952 = vpop.f32.mrf.mxu0
    %v953 = vadd.f32 0.0, %v952
    %v954 = vpop.f32.mrf.mxu0
    %v955 = vpop.f32.mrf.mxu0
    %v956 = vadd.f32 0.0, %v955
    %v957 = vpop.f32.mrf.mxu0
    %958 = vmatprep.mubr.bf16.mxu0 0
    %959 = vmatmul.mubr.bf16.gmra.mxu0 %v385
    %v960 = vpop.f32.mrf.mxu0
    %v961 = vadd.f32 0.0, %v960
    %v962 = vpop.f32.mrf.mxu0
    %v963 = vpop.f32.mrf.mxu0
    %v964 = vadd.f32 0.0, %v963
    %v965 = vpop.f32.mrf.mxu0
    %966 = vdwg.mxu0
    %v967 = vadd.f32 %v849, %v953
    %v968 = vadd.f32 %v850, %v956
    %v969 = vadd.f32 %v851, %v961
    %v970 = vadd.f32 %v852, %v964
    %s971 = scalar_lea.vmem [#allocation2], 320
    %v972 = vld [vmem:[%s971] sm:$0xf]
    %v973 = vld [vmem:[%s971 + $0x4] sm:$0xf]
    %v974 = vld [vmem:[%s971 + $0x8] sm:$0xf]
    %v975 = vld [vmem:[%s971 + $0xc] sm:$0xf]
    %v976 = vld [vmem:[%s971 + $0x10] sm:$0xf]
    %v977 = vld [vmem:[%s971 + $0x14] sm:$0xf]
    %v978 = vld [vmem:[%s971 + $0x18] sm:$0xf]
    %v979 = vld [vmem:[%s971 + $0x1c] sm:$0xf]
    %v980 = vld [vmem:[%s971 + $0x20] sm:$0xf]
    %v981 = vld [vmem:[%s971 + $0x24] sm:$0xf]
    %v982 = vld [vmem:[%s971 + $0x28] sm:$0xf]
    %v983 = vld [vmem:[%s971 + $0x2c] sm:$0xf]
    %v984 = vld [vmem:[%s971 + $0x30] sm:$0xf]
    %v985 = vld [vmem:[%s971 + $0x34] sm:$0xf]
    %v986 = vld [vmem:[%s971 + $0x38] sm:$0xf]
    %v987 = vld [vmem:[%s971 + $0x3c] sm:$0xf]
    %v1004 = vunpack.c.l.b16 %v972
    %v1005 = vunpack.c.l.b16 %v973
    %v1006 = vunpack.c.l.b16 %v974
    %v1007 = vunpack.c.l.b16 %v975
    %v1008 = vunpack.c.l.b16 %v976
    %v1009 = vunpack.c.l.b16 %v977
    %v1010 = vunpack.c.l.b16 %v978
    %v1011 = vunpack.c.l.b16 %v979
    %v1012 = vunpack.c.l.b16 %v980
    %v1013 = vunpack.c.l.b16 %v981
    %v1014 = vunpack.c.l.b16 %v982
    %v1015 = vunpack.c.l.b16 %v983
    %v1016 = vunpack.c.l.b16 %v984
    %v1017 = vunpack.c.l.b16 %v985
    %v1018 = vunpack.c.l.b16 %v986
    %v1019 = vunpack.c.l.b16 %v987
    %v1020 = vpack.c.b16 %v1005, %v1004
    %v1021 = vpack.c.b16 %v1007, %v1006
    %v1022 = vpack.c.b16 %v1009, %v1008
    %v1023 = vpack.c.b16 %v1011, %v1010
    %v1024 = vpack.c.b16 %v1013, %v1012
    %v1025 = vpack.c.b16 %v1015, %v1014
    %v1026 = vpack.c.b16 %v1017, %v1016
    %v1027 = vpack.c.b16 %v1019, %v1018
    %1036 = vmatprep.subr.bf16.mxu0 0
    %1037 = vmatpush1.bf16.msra.mxu0 %v1027
    %1038 = vmatprep.subr.bf16.mxu0 0
    %1039 = vmatpush1.bf16.msra.mxu0 %v1026
    %1040 = vmatprep.subr.bf16.mxu0 0
    %1041 = vmatpush1.bf16.msra.mxu0 %v1025
    %1042 = vmatprep.subr.bf16.mxu0 0
    %1043 = vmatpush1.bf16.msra.mxu0 %v1024
    %1044 = vmatprep.subr.bf16.mxu0 0
    %1045 = vmatpush1.bf16.msra.mxu0 %v1023
    %1046 = vmatprep.subr.bf16.mxu0 0
    %1047 = vmatpush1.bf16.msra.mxu0 %v1022
    %1048 = vmatprep.subr.bf16.mxu0 0
    %1049 = vmatpush1.bf16.msra.mxu0 %v1021
    %1050 = vmatprep.subr.bf16.mxu0 0
    %1051 = vmatpush1.bf16.msra.mxu0 %v1020
    %1052 = vmatprep.subr.bf16.mxu0 0
    %1053 = vmatpush2.bf16.msra.mxu0 0
    %1054 = vmatprep.subr.bf16.mxu0 0
    %1055 = vmatpush2.bf16.msra.mxu0 0
    %1056 = vmatprep.subr.bf16.mxu0 0
    %1057 = vmatpush2.bf16.msra.mxu0 0
    %1058 = vmatprep.subr.bf16.mxu0 0
    %1059 = vmatpush2.bf16.msra.mxu0 0
    %1060 = vmatprep.subr.bf16.mxu0 0
    %1061 = vmatpush2.bf16.msra.mxu0 0
    %1062 = vmatprep.subr.bf16.mxu0 0
    %1063 = vmatpush2.bf16.msra.mxu0 0
    %1064 = vmatprep.subr.bf16.mxu0 0
    %1065 = vmatpush2.bf16.msra.mxu0 0
    %1066 = vmatprep.subr.bf16.mxu0 0
    %1067 = vmatpush2.bf16.msra.mxu0 0
    %1068 = vmatprep.mubr.bf16.mxu0 0
    %1069 = vmatmul.mubr.bf16.gmra.mxu0 %v386
    %v1070 = vpop.f32.mrf.mxu0
    %v1071 = vadd.f32 0.0, %v1070
    %v1072 = vpop.f32.mrf.mxu0
    %v1073 = vpop.f32.mrf.mxu0
    %v1074 = vadd.f32 0.0, %v1073
    %v1075 = vpop.f32.mrf.mxu0
    %1076 = vmatprep.mubr.bf16.mxu0 0
    %1077 = vmatmul.mubr.bf16.gmra.mxu0 %v387
    %v1078 = vpop.f32.mrf.mxu0
    %v1079 = vadd.f32 0.0, %v1078
    %v1080 = vpop.f32.mrf.mxu0
    %v1081 = vpop.f32.mrf.mxu0
    %v1082 = vadd.f32 0.0, %v1081
    %v1083 = vpop.f32.mrf.mxu0
    %1084 = vdwg.mxu0
    %v1085 = vadd.f32 %v967, %v1071
    %v1086 = vadd.f32 %v968, %v1074
    %v1087 = vadd.f32 %v969, %v1079
    %v1088 = vadd.f32 %v970, %v1082
    %s1089 = scalar_lea.vmem [#allocation2], 384
    %v1090 = vld [vmem:[%s1089] sm:$0xf]
    %v1091 = vld [vmem:[%s1089 + $0x4] sm:$0xf]
    %v1092 = vld [vmem:[%s1089 + $0x8] sm:$0xf]
    %v1093 = vld [vmem:[%s1089 + $0xc] sm:$0xf]
    %v1094 = vld [vmem:[%s1089 + $0x10] sm:$0xf]
    %v1095 = vld [vmem:[%s1089 + $0x14] sm:$0xf]
    %v1096 = vld [vmem:[%s1089 + $0x18] sm:$0xf]
    %v1097 = vld [vmem:[%s1089 + $0x1c] sm:$0xf]
    %v1098 = vld [vmem:[%s1089 + $0x20] sm:$0xf]
    %v1099 = vld [vmem:[%s1089 + $0x24] sm:$0xf]
    %v1100 = vld [vmem:[%s1089 + $0x28] sm:$0xf]
    %v1101 = vld [vmem:[%s1089 + $0x2c] sm:$0xf]
    %v1102 = vld [vmem:[%s1089 + $0x30] sm:$0xf]
    %v1103 = vld [vmem:[%s1089 + $0x34] sm:$0xf]
    %v1104 = vld [vmem:[%s1089 + $0x38] sm:$0xf]
    %v1105 = vld [vmem:[%s1089 + $0x3c] sm:$0xf]
    %v1122 = vunpack.c.l.b16 %v1090
    %v1123 = vunpack.c.l.b16 %v1091
    %v1124 = vunpack.c.l.b16 %v1092
    %v1125 = vunpack.c.l.b16 %v1093
    %v1126 = vunpack.c.l.b16 %v1094
    %v1127 = vunpack.c.l.b16 %v1095
    %v1128 = vunpack.c.l.b16 %v1096
    %v1129 = vunpack.c.l.b16 %v1097
    %v1130 = vunpack.c.l.b16 %v1098
    %v1131 = vunpack.c.l.b16 %v1099
    %v1132 = vunpack.c.l.b16 %v1100
    %v1133 = vunpack.c.l.b16 %v1101
    %v1134 = vunpack.c.l.b16 %v1102
    %v1135 = vunpack.c.l.b16 %v1103
    %v1136 = vunpack.c.l.b16 %v1104
    %v1137 = vunpack.c.l.b16 %v1105
    %v1138 = vpack.c.b16 %v1123, %v1122
    %v1139 = vpack.c.b16 %v1125, %v1124
    %v1140 = vpack.c.b16 %v1127, %v1126
    %v1141 = vpack.c.b16 %v1129, %v1128
    %v1142 = vpack.c.b16 %v1131, %v1130
    %v1143 = vpack.c.b16 %v1133, %v1132
    %v1144 = vpack.c.b16 %v1135, %v1134
    %v1145 = vpack.c.b16 %v1137, %v1136
    %1154 = vmatprep.subr.bf16.mxu0 0
    %1155 = vmatpush1.bf16.msra.mxu0 %v1145
    %1156 = vmatprep.subr.bf16.mxu0 0
    %1157 = vmatpush1.bf16.msra.mxu0 %v1144
    %1158 = vmatprep.subr.bf16.mxu0 0
    %1159 = vmatpush1.bf16.msra.mxu0 %v1143
    %1160 = vmatprep.subr.bf16.mxu0 0
    %1161 = vmatpush1.bf16.msra.mxu0 %v1142
    %1162 = vmatprep.subr.bf16.mxu0 0
    %1163 = vmatpush1.bf16.msra.mxu0 %v1141
    %1164 = vmatprep.subr.bf16.mxu0 0
    %1165 = vmatpush1.bf16.msra.mxu0 %v1140
    %1166 = vmatprep.subr.bf16.mxu0 0
    %1167 = vmatpush1.bf16.msra.mxu0 %v1139
    %1168 = vmatprep.subr.bf16.mxu0 0
    %1169 = vmatpush1.bf16.msra.mxu0 %v1138
    %1170 = vmatprep.subr.bf16.mxu0 0
    %1171 = vmatpush2.bf16.msra.mxu0 0
    %1172 = vmatprep.subr.bf16.mxu0 0
    %1173 = vmatpush2.bf16.msra.mxu0 0
    %1174 = vmatprep.subr.bf16.mxu0 0
    %1175 = vmatpush2.bf16.msra.mxu0 0
    %1176 = vmatprep.subr.bf16.mxu0 0
    %1177 = vmatpush2.bf16.msra.mxu0 0
    %1178 = vmatprep.subr.bf16.mxu0 0
    %1179 = vmatpush2.bf16.msra.mxu0 0
    %1180 = vmatprep.subr.bf16.mxu0 0
    %1181 = vmatpush2.bf16.msra.mxu0 0
    %1182 = vmatprep.subr.bf16.mxu0 0
    %1183 = vmatpush2.bf16.msra.mxu0 0
    %1184 = vmatprep.subr.bf16.mxu0 0
    %1185 = vmatpush2.bf16.msra.mxu0 0
    %1186 = vmatprep.mubr.bf16.mxu0 0
    %1187 = vmatmul.mubr.bf16.gmra.mxu0 %v388
    %v1188 = vpop.f32.mrf.mxu0
    %v1189 = vadd.f32 0.0, %v1188
    %v1190 = vpop.f32.mrf.mxu0
    %v1191 = vpop.f32.mrf.mxu0
    %v1192 = vadd.f32 0.0, %v1191
    %v1193 = vpop.f32.mrf.mxu0
    %1194 = vmatprep.mubr.bf16.mxu0 0
    %1195 = vmatmul.mubr.bf16.gmra.mxu0 %v389
    %v1196 = vpop.f32.mrf.mxu0
    %v1197 = vadd.f32 0.0, %v1196
    %v1198 = vpop.f32.mrf.mxu0
    %v1199 = vpop.f32.mrf.mxu0
    %v1200 = vadd.f32 0.0, %v1199
    %v1201 = vpop.f32.mrf.mxu0
    %1202 = vdwg.mxu0
    %v1203 = vadd.f32 %v1085, %v1189
    %v1204 = vadd.f32 %v1086, %v1192
    %v1205 = vadd.f32 %v1087, %v1197
    %v1206 = vadd.f32 %v1088, %v1200
    %v1207 = vld [vmem:[%s3] sm:$0x1]
    %v1209 = vlaneseq
    %v1210 = vshrl.u32 %v1209, 7
    %v1211 = vsub.s32 0, %v1210
    %v1212 = vrot.slane %v1207, %v1211
    %v1214 = vadd.f32 %v1203, %v1212
    %v1215 = vadd.f32 %v1204, %v1212
    %v1216 = vadd.f32 %v1205, %v1212
    %v1217 = vadd.f32 %v1206, %v1212
    %v1218 = vmax.f32 %v1214, 0.0
    %v1219 = vmax.f32 %v1215, 0.0
    %v1220 = vmax.f32 %v1216, 0.0
    %v1221 = vmax.f32 %v1217, 0.0
    %v1222 = vld [vmem:[%s4] sm:$0xf]
    %v1223 = vld [vmem:[%s4 + $0x4] sm:$0xf]
    %v1224 = vld [vmem:[%s4 + $0x8] sm:$0xf]
    %v1225 = vld [vmem:[%s4 + $0xc] sm:$0xf]
    %v1226 = vld [vmem:[%s4 + $0x10] sm:$0xf]
    %v1227 = vld [vmem:[%s4 + $0x14] sm:$0xf]
    %v1228 = vld [vmem:[%s4 + $0x18] sm:$0xf]
    %v1229 = vld [vmem:[%s4 + $0x1c] sm:$0xf]
    %v1230 = vpack.c.bf16 %v1219, %v1218
    %v1231 = vpack.c.bf16 %v1221, %v1220
    %v1240 = vunpack.c.l.b16 %v1222
    %v1241 = vunpack.c.l.b16 %v1223
    %v1242 = vunpack.c.l.b16 %v1224
    %v1243 = vunpack.c.l.b16 %v1225
    %v1244 = vunpack.c.l.b16 %v1226
    %v1245 = vunpack.c.l.b16 %v1227
    %v1246 = vunpack.c.l.b16 %v1228
    %v1247 = vunpack.c.l.b16 %v1229
    %v1248 = vpack.c.b16 %v1241, %v1240
    %v1249 = vpack.c.b16 %v1243, %v1242
    %v1250 = vpack.c.b16 %v1245, %v1244
    %v1251 = vpack.c.b16 %v1247, %v1246
    %v1253 = vsel %vm188, %v1248, 0
    %v1256 = vsel %vm188, %v1249, 0
    %v1259 = vsel %vm188, %v1250, 0
    %v1262 = vsel %vm188, %v1251, 0
    %1264 = vmatprep.subr.bf16.mxu0 0
    %1265 = vmatpush1.bf16.msra.mxu0 0
    %1266 = vmatprep.subr.bf16.mxu0 0
    %1267 = vmatpush1.bf16.msra.mxu0 0
    %1268 = vmatprep.subr.bf16.mxu0 0
    %1269 = vmatpush1.bf16.msra.mxu0 0
    %1270 = vmatprep.subr.bf16.mxu0 0
    %1271 = vmatpush1.bf16.msra.mxu0 0
    %1272 = vmatprep.subr.bf16.mxu0 0
    %1273 = vmatpush1.bf16.msra.mxu0 0
    %1274 = vmatprep.subr.bf16.mxu0 0
    %1275 = vmatpush1.bf16.msra.mxu0 0
    %1276 = vmatprep.subr.bf16.mxu0 0
    %1277 = vmatpush1.bf16.msra.mxu0 %v1231
    %1278 = vmatprep.subr.bf16.mxu0 0
    %1279 = vmatpush1.bf16.msra.mxu0 %v1230
    %1280 = vmatprep.subr.bf16.mxu0 0
    %1281 = vmatpush2.bf16.msra.mxu0 0
    %1282 = vmatprep.subr.bf16.mxu0 0
    %1283 = vmatpush2.bf16.msra.mxu0 0
    %1284 = vmatprep.subr.bf16.mxu0 0
    %1285 = vmatpush2.bf16.msra.mxu0 0
    %1286 = vmatprep.subr.bf16.mxu0 0
    %1287 = vmatpush2.bf16.msra.mxu0 0
    %1288 = vmatprep.subr.bf16.mxu0 0
    %1289 = vmatpush2.bf16.msra.mxu0 0
    %1290 = vmatprep.subr.bf16.mxu0 0
    %1291 = vmatpush2.bf16.msra.mxu0 0
    %1292 = vmatprep.subr.bf16.mxu0 0
    %1293 = vmatpush2.bf16.msra.mxu0 0
    %1294 = vmatprep.subr.bf16.mxu0 0
    %1295 = vmatpush2.bf16.msra.mxu0 0
    %1296 = vmatprep.mubr.bf16.mxu0 0
    %1297 = vmatmul.mubr.bf16.gmra.mxu0 %v1253
    %v1298 = vpop.f32.mrf.mxu0
    %v1299 = vadd.f32 0.0, %v1298
    %v1300 = vpop.f32.mrf.mxu0
    %v1301 = vpop.f32.mrf.mxu0
    %v1302 = vadd.f32 0.0, %v1301
    %v1303 = vpop.f32.mrf.mxu0
    %1304 = vmatprep.mubr.bf16.mxu0 0
    %1305 = vmatmul.mubr.bf16.gmra.mxu0 %v1256
    %v1306 = vpop.f32.mrf.mxu0
    %v1307 = vadd.f32 0.0, %v1306
    %v1308 = vpop.f32.mrf.mxu0
    %v1309 = vpop.f32.mrf.mxu0
    %v1310 = vadd.f32 0.0, %v1309
    %v1311 = vpop.f32.mrf.mxu0
    %1312 = vmatprep.mubr.bf16.mxu0 0
    %1313 = vmatmul.mubr.bf16.gmra.mxu0 %v1259
    %v1314 = vpop.f32.mrf.mxu0
    %v1315 = vadd.f32 0.0, %v1314
    %v1316 = vpop.f32.mrf.mxu0
    %v1317 = vpop.f32.mrf.mxu0
    %v1318 = vadd.f32 0.0, %v1317
    %v1319 = vpop.f32.mrf.mxu0
    %1320 = vmatprep.mubr.bf16.mxu0 0
    %1321 = vmatmul.mubr.bf16.gmra.mxu0 %v1262
    %v1322 = vpop.f32.mrf.mxu0
    %v1323 = vadd.f32 0.0, %v1322
    %v1324 = vpop.f32.mrf.mxu0
    %v1325 = vpop.f32.mrf.mxu0
    %v1326 = vadd.f32 0.0, %v1325
    %v1327 = vpop.f32.mrf.mxu0
    %1328 = vdwg.mxu0
    %v1329 = vpack.c.bf16 %v1302, %v1299
    %v1330 = vpack.c.bf16 %v1310, %v1307
    %v1331 = vpack.c.bf16 %v1318, %v1315
    %v1332 = vpack.c.bf16 %v1326, %v1323
    %v1333 = vld [vmem:[#allocation5] sm:$0xf]
    %v1334 = vld [vmem:[#allocation5 + $0x4] sm:$0xf]
    %v1335 = vld [vmem:[#allocation5 + $0x8] sm:$0xf]
    %v1336 = vld [vmem:[#allocation5 + $0xc] sm:$0xf]
    %v1337 = vld [vmem:[#allocation5 + $0x10] sm:$0xf]
    %v1338 = vld [vmem:[#allocation5 + $0x14] sm:$0xf]
    %v1339 = vld [vmem:[#allocation5 + $0x18] sm:$0xf]
    %v1340 = vld [vmem:[#allocation5 + $0x1c] sm:$0xf]
    %v1341 = vld [vmem:[#allocation5 + $0x20] sm:$0xf]
    %v1342 = vld [vmem:[#allocation5 + $0x24] sm:$0xf]
    %v1343 = vld [vmem:[#allocation5 + $0x28] sm:$0xf]
    %v1344 = vld [vmem:[#allocation5 + $0x2c] sm:$0xf]
    %v1345 = vld [vmem:[#allocation5 + $0x30] sm:$0xf]
    %v1346 = vld [vmem:[#allocation5 + $0x34] sm:$0xf]
    %v1347 = vld [vmem:[#allocation5 + $0x38] sm:$0xf]
    %v1348 = vld [vmem:[#allocation5 + $0x3c] sm:$0xf]
    %s1349 = scalar_lea.vmem [#allocation5], 64
    %v1350 = vld [vmem:[%s1349] sm:$0xf]
    %v1351 = vld [vmem:[%s1349 + $0x4] sm:$0xf]
    %v1352 = vld [vmem:[%s1349 + $0x8] sm:$0xf]
    %v1353 = vld [vmem:[%s1349 + $0xc] sm:$0xf]
    %v1354 = vld [vmem:[%s1349 + $0x10] sm:$0xf]
    %v1355 = vld [vmem:[%s1349 + $0x14] sm:$0xf]
    %v1356 = vld [vmem:[%s1349 + $0x18] sm:$0xf]
    %v1357 = vld [vmem:[%s1349 + $0x1c] sm:$0xf]
    %v1358 = vld [vmem:[%s1349 + $0x20] sm:$0xf]
    %v1359 = vld [vmem:[%s1349 + $0x24] sm:$0xf]
    %v1360 = vld [vmem:[%s1349 + $0x28] sm:$0xf]
    %v1361 = vld [vmem:[%s1349 + $0x2c] sm:$0xf]
    %v1362 = vld [vmem:[%s1349 + $0x30] sm:$0xf]
    %v1363 = vld [vmem:[%s1349 + $0x34] sm:$0xf]
    %v1364 = vld [vmem:[%s1349 + $0x38] sm:$0xf]
    %v1365 = vld [vmem:[%s1349 + $0x3c] sm:$0xf]
    %v1382 = vunpack.c.l.b16 %v1350
    %v1383 = vunpack.c.l.b16 %v1351
    %v1384 = vunpack.c.l.b16 %v1352
    %v1385 = vunpack.c.l.b16 %v1353
    %v1386 = vunpack.c.l.b16 %v1354
    %v1387 = vunpack.c.l.b16 %v1355
    %v1388 = vunpack.c.l.b16 %v1356
    %v1389 = vunpack.c.l.b16 %v1357
    %v1390 = vunpack.c.l.b16 %v1358
    %v1391 = vunpack.c.l.b16 %v1359
    %v1392 = vunpack.c.l.b16 %v1360
    %v1393 = vunpack.c.l.b16 %v1361
    %v1394 = vunpack.c.l.b16 %v1362
    %v1395 = vunpack.c.l.b16 %v1363
    %v1396 = vunpack.c.l.b16 %v1364
    %v1397 = vunpack.c.l.b16 %v1365
    %v1398 = vpack.c.b16 %v1383, %v1382
    %v1399 = vpack.c.b16 %v1385, %v1384
    %v1400 = vpack.c.b16 %v1387, %v1386
    %v1401 = vpack.c.b16 %v1389, %v1388
    %v1402 = vpack.c.b16 %v1391, %v1390
    %v1403 = vpack.c.b16 %v1393, %v1392
    %v1404 = vpack.c.b16 %v1395, %v1394
    %v1405 = vpack.c.b16 %v1397, %v1396
    %1414 = vmatprep.subr.bf16.mxu0 0
    %1415 = vmatpush1.bf16.msra.mxu0 %v1405
    %1416 = vmatprep.subr.bf16.mxu0 0
    %1417 = vmatpush1.bf16.msra.mxu0 %v1404
    %1418 = vmatprep.subr.bf16.mxu0 0
    %1419 = vmatpush1.bf16.msra.mxu0 %v1403
    %1420 = vmatprep.subr.bf16.mxu0 0
    %1421 = vmatpush1.bf16.msra.mxu0 %v1402
    %1422 = vmatprep.subr.bf16.mxu0 0
    %1423 = vmatpush1.bf16.msra.mxu0 %v1401
    %1424 = vmatprep.subr.bf16.mxu0 0
    %1425 = vmatpush1.bf16.msra.mxu0 %v1400
    %1426 = vmatprep.subr.bf16.mxu0 0
    %1427 = vmatpush1.bf16.msra.mxu0 %v1399
    %1428 = vmatprep.subr.bf16.mxu0 0
    %1429 = vmatpush1.bf16.msra.mxu0 %v1398
    %1430 = vmatprep.subr.bf16.mxu0 0
    %1431 = vmatpush2.bf16.msra.mxu0 0
    %1432 = vmatprep.subr.bf16.mxu0 0
    %1433 = vmatpush2.bf16.msra.mxu0 0
    %1434 = vmatprep.subr.bf16.mxu0 0
    %1435 = vmatpush2.bf16.msra.mxu0 0
    %1436 = vmatprep.subr.bf16.mxu0 0
    %1437 = vmatpush2.bf16.msra.mxu0 0
    %1438 = vmatprep.subr.bf16.mxu0 0
    %1439 = vmatpush2.bf16.msra.mxu0 0
    %1440 = vmatprep.subr.bf16.mxu0 0
    %1441 = vmatpush2.bf16.msra.mxu0 0
    %1442 = vmatprep.subr.bf16.mxu0 0
    %1443 = vmatpush2.bf16.msra.mxu0 0
    %1444 = vmatprep.subr.bf16.mxu0 0
    %1445 = vmatpush2.bf16.msra.mxu0 0
    %1446 = vmatprep.mubr.bf16.mxu0 0
    %1447 = vmatmul.mubr.bf16.gmra.mxu0 %v1330
    %v1448 = vpop.f32.mrf.mxu0
    %v1449 = vadd.f32 0.0, %v1448
    %v1450 = vpop.f32.mrf.mxu0
    %v1451 = vpop.f32.mrf.mxu0
    %v1452 = vadd.f32 0.0, %v1451
    %v1453 = vpop.f32.mrf.mxu0
    %1454 = vdwg.mxu0
    %v1471 = vunpack.c.l.b16 %v1333
    %v1472 = vunpack.c.l.b16 %v1334
    %v1473 = vunpack.c.l.b16 %v1335
    %v1474 = vunpack.c.l.b16 %v1336
    %v1475 = vunpack.c.l.b16 %v1337
    %v1476 = vunpack.c.l.b16 %v1338
    %v1477 = vunpack.c.l.b16 %v1339
    %v1478 = vunpack.c.l.b16 %v1340
    %v1479 = vunpack.c.l.b16 %v1341
    %v1480 = vunpack.c.l.b16 %v1342
    %v1481 = vunpack.c.l.b16 %v1343
    %v1482 = vunpack.c.l.b16 %v1344
    %v1483 = vunpack.c.l.b16 %v1345
    %v1484 = vunpack.c.l.b16 %v1346
    %v1485 = vunpack.c.l.b16 %v1347
    %v1486 = vunpack.c.l.b16 %v1348
    %v1487 = vpack.c.b16 %v1472, %v1471
    %v1488 = vpack.c.b16 %v1474, %v1473
    %v1489 = vpack.c.b16 %v1476, %v1475
    %v1490 = vpack.c.b16 %v1478, %v1477
    %v1491 = vpack.c.b16 %v1480, %v1479
    %v1492 = vpack.c.b16 %v1482, %v1481
    %v1493 = vpack.c.b16 %v1484, %v1483
    %v1494 = vpack.c.b16 %v1486, %v1485
    %1503 = vmatprep.subr.bf16.mxu0 0
    %1504 = vmatpush1.bf16.msra.mxu0 %v1494
    %1505 = vmatprep.subr.bf16.mxu0 0
    %1506 = vmatpush1.bf16.msra.mxu0 %v1493
    %1507 = vmatprep.subr.bf16.mxu0 0
    %1508 = vmatpush1.bf16.msra.mxu0 %v1492
    %1509 = vmatprep.subr.bf16.mxu0 0
    %1510 = vmatpush1.bf16.msra.mxu0 %v1491
    %1511 = vmatprep.subr.bf16.mxu0 0
    %1512 = vmatpush1.bf16.msra.mxu0 %v1490
    %1513 = vmatprep.subr.bf16.mxu0 0
    %1514 = vmatpush1.bf16.msra.mxu0 %v1489
    %1515 = vmatprep.subr.bf16.mxu0 0
    %1516 = vmatpush1.bf16.msra.mxu0 %v1488
    %1517 = vmatprep.subr.bf16.mxu0 0
    %1518 = vmatpush1.bf16.msra.mxu0 %v1487
    %1519 = vmatprep.subr.bf16.mxu0 0
    %1520 = vmatpush2.bf16.msra.mxu0 0
    %1521 = vmatprep.subr.bf16.mxu0 0
    %1522 = vmatpush2.bf16.msra.mxu0 0
    %1523 = vmatprep.subr.bf16.mxu0 0
    %1524 = vmatpush2.bf16.msra.mxu0 0
    %1525 = vmatprep.subr.bf16.mxu0 0
    %1526 = vmatpush2.bf16.msra.mxu0 0
    %1527 = vmatprep.subr.bf16.mxu0 0
    %1528 = vmatpush2.bf16.msra.mxu0 0
    %1529 = vmatprep.subr.bf16.mxu0 0
    %1530 = vmatpush2.bf16.msra.mxu0 0
    %1531 = vmatprep.subr.bf16.mxu0 0
    %1532 = vmatpush2.bf16.msra.mxu0 0
    %1533 = vmatprep.subr.bf16.mxu0 0
    %1534 = vmatpush2.bf16.msra.mxu0 0
    %1535 = vmatprep.mubr.bf16.mxu0 0
    %1536 = vmatmul.mubr.bf16.gmra.mxu0 %v1329
    %v1537 = vpop.f32.mrf.mxu0
    %v1538 = vadd.f32 %v1449, %v1537
    %v1539 = vpop.f32.mrf.mxu0
    %v1540 = vpop.f32.mrf.mxu0
    %v1541 = vadd.f32 %v1452, %v1540
    %v1542 = vpop.f32.mrf.mxu0
    %1543 = vdwg.mxu0
    %s1544 = scalar_lea.vmem [#allocation5], 128
    %v1545 = vld [vmem:[%s1544] sm:$0xf]
    %v1546 = vld [vmem:[%s1544 + $0x4] sm:$0xf]
    %v1547 = vld [vmem:[%s1544 + $0x8] sm:$0xf]
    %v1548 = vld [vmem:[%s1544 + $0xc] sm:$0xf]
    %v1549 = vld [vmem:[%s1544 + $0x10] sm:$0xf]
    %v1550 = vld [vmem:[%s1544 + $0x14] sm:$0xf]
    %v1551 = vld [vmem:[%s1544 + $0x18] sm:$0xf]
    %v1552 = vld [vmem:[%s1544 + $0x1c] sm:$0xf]
    %v1553 = vld [vmem:[%s1544 + $0x20] sm:$0xf]
    %v1554 = vld [vmem:[%s1544 + $0x24] sm:$0xf]
    %v1555 = vld [vmem:[%s1544 + $0x28] sm:$0xf]
    %v1556 = vld [vmem:[%s1544 + $0x2c] sm:$0xf]
    %v1557 = vld [vmem:[%s1544 + $0x30] sm:$0xf]
    %v1558 = vld [vmem:[%s1544 + $0x34] sm:$0xf]
    %v1559 = vld [vmem:[%s1544 + $0x38] sm:$0xf]
    %v1560 = vld [vmem:[%s1544 + $0x3c] sm:$0xf]
    %v1577 = vunpack.c.l.b16 %v1545
    %v1578 = vunpack.c.l.b16 %v1546
    %v1579 = vunpack.c.l.b16 %v1547
    %v1580 = vunpack.c.l.b16 %v1548
    %v1581 = vunpack.c.l.b16 %v1549
    %v1582 = vunpack.c.l.b16 %v1550
    %v1583 = vunpack.c.l.b16 %v1551
    %v1584 = vunpack.c.l.b16 %v1552
    %v1585 = vunpack.c.l.b16 %v1553
    %v1586 = vunpack.c.l.b16 %v1554
    %v1587 = vunpack.c.l.b16 %v1555
    %v1588 = vunpack.c.l.b16 %v1556
    %v1589 = vunpack.c.l.b16 %v1557
    %v1590 = vunpack.c.l.b16 %v1558
    %v1591 = vunpack.c.l.b16 %v1559
    %v1592 = vunpack.c.l.b16 %v1560
    %v1593 = vpack.c.b16 %v1578, %v1577
    %v1594 = vpack.c.b16 %v1580, %v1579
    %v1595 = vpack.c.b16 %v1582, %v1581
    %v1596 = vpack.c.b16 %v1584, %v1583
    %v1597 = vpack.c.b16 %v1586, %v1585
    %v1598 = vpack.c.b16 %v1588, %v1587
    %v1599 = vpack.c.b16 %v1590, %v1589
    %v1600 = vpack.c.b16 %v1592, %v1591
    %1609 = vmatprep.subr.bf16.mxu0 0
    %1610 = vmatpush1.bf16.msra.mxu0 %v1600
    %1611 = vmatprep.subr.bf16.mxu0 0
    %1612 = vmatpush1.bf16.msra.mxu0 %v1599
    %1613 = vmatprep.subr.bf16.mxu0 0
    %1614 = vmatpush1.bf16.msra.mxu0 %v1598
    %1615 = vmatprep.subr.bf16.mxu0 0
    %1616 = vmatpush1.bf16.msra.mxu0 %v1597
    %1617 = vmatprep.subr.bf16.mxu0 0
    %1618 = vmatpush1.bf16.msra.mxu0 %v1596
    %1619 = vmatprep.subr.bf16.mxu0 0
    %1620 = vmatpush1.bf16.msra.mxu0 %v1595
    %1621 = vmatprep.subr.bf16.mxu0 0
    %1622 = vmatpush1.bf16.msra.mxu0 %v1594
    %1623 = vmatprep.subr.bf16.mxu0 0
    %1624 = vmatpush1.bf16.msra.mxu0 %v1593
    %1625 = vmatprep.subr.bf16.mxu0 0
    %1626 = vmatpush2.bf16.msra.mxu0 0
    %1627 = vmatprep.subr.bf16.mxu0 0
    %1628 = vmatpush2.bf16.msra.mxu0 0
    %1629 = vmatprep.subr.bf16.mxu0 0
    %1630 = vmatpush2.bf16.msra.mxu0 0
    %1631 = vmatprep.subr.bf16.mxu0 0
    %1632 = vmatpush2.bf16.msra.mxu0 0
    %1633 = vmatprep.subr.bf16.mxu0 0
    %1634 = vmatpush2.bf16.msra.mxu0 0
    %1635 = vmatprep.subr.bf16.mxu0 0
    %1636 = vmatpush2.bf16.msra.mxu0 0
    %1637 = vmatprep.subr.bf16.mxu0 0
    %1638 = vmatpush2.bf16.msra.mxu0 0
    %1639 = vmatprep.subr.bf16.mxu0 0
    %1640 = vmatpush2.bf16.msra.mxu0 0
    %1641 = vmatprep.mubr.bf16.mxu0 0
    %1642 = vmatmul.mubr.bf16.gmra.mxu0 %v1331
    %v1643 = vpop.f32.mrf.mxu0
    %v1644 = vadd.f32 0.0, %v1643
    %v1645 = vpop.f32.mrf.mxu0
    %v1646 = vpop.f32.mrf.mxu0
    %v1647 = vadd.f32 0.0, %v1646
    %v1648 = vpop.f32.mrf.mxu0
    %1649 = vdwg.mxu0
    %v1650 = vadd.f32 %v1538, %v1644
    %v1651 = vadd.f32 %v1541, %v1647
    %s1652 = scalar_lea.vmem [#allocation5], 192
    %v1653 = vld [vmem:[%s1652] sm:$0xf]
    %v1654 = vld [vmem:[%s1652 + $0x4] sm:$0xf]
    %v1655 = vld [vmem:[%s1652 + $0x8] sm:$0xf]
    %v1656 = vld [vmem:[%s1652 + $0xc] sm:$0xf]
    %v1657 = vld [vmem:[%s1652 + $0x10] sm:$0xf]
    %v1658 = vld [vmem:[%s1652 + $0x14] sm:$0xf]
    %v1659 = vld [vmem:[%s1652 + $0x18] sm:$0xf]
    %v1660 = vld [vmem:[%s1652 + $0x1c] sm:$0xf]
    %v1661 = vld [vmem:[%s1652 + $0x20] sm:$0xf]
    %v1662 = vld [vmem:[%s1652 + $0x24] sm:$0xf]
    %v1663 = vld [vmem:[%s1652 + $0x28] sm:$0xf]
    %v1664 = vld [vmem:[%s1652 + $0x2c] sm:$0xf]
    %v1665 = vld [vmem:[%s1652 + $0x30] sm:$0xf]
    %v1666 = vld [vmem:[%s1652 + $0x34] sm:$0xf]
    %v1667 = vld [vmem:[%s1652 + $0x38] sm:$0xf]
    %v1668 = vld [vmem:[%s1652 + $0x3c] sm:$0xf]
    %v1685 = vunpack.c.l.b16 %v1653
    %v1686 = vunpack.c.l.b16 %v1654
    %v1687 = vunpack.c.l.b16 %v1655
    %v1688 = vunpack.c.l.b16 %v1656
    %v1689 = vunpack.c.l.b16 %v1657
    %v1690 = vunpack.c.l.b16 %v1658
    %v1691 = vunpack.c.l.b16 %v1659
    %v1692 = vunpack.c.l.b16 %v1660
    %v1693 = vunpack.c.l.b16 %v1661
    %v1694 = vunpack.c.l.b16 %v1662
    %v1695 = vunpack.c.l.b16 %v1663
    %v1696 = vunpack.c.l.b16 %v1664
    %v1697 = vunpack.c.l.b16 %v1665
    %v1698 = vunpack.c.l.b16 %v1666
    %v1699 = vunpack.c.l.b16 %v1667
    %v1700 = vunpack.c.l.b16 %v1668
    %v1701 = vpack.c.b16 %v1686, %v1685
    %v1702 = vpack.c.b16 %v1688, %v1687
    %v1703 = vpack.c.b16 %v1690, %v1689
    %v1704 = vpack.c.b16 %v1692, %v1691
    %v1705 = vpack.c.b16 %v1694, %v1693
    %v1706 = vpack.c.b16 %v1696, %v1695
    %v1707 = vpack.c.b16 %v1698, %v1697
    %v1708 = vpack.c.b16 %v1700, %v1699
    %1717 = vmatprep.subr.bf16.mxu0 0
    %1718 = vmatpush1.bf16.msra.mxu0 %v1708
    %1719 = vmatprep.subr.bf16.mxu0 0
    %1720 = vmatpush1.bf16.msra.mxu0 %v1707
    %1721 = vmatprep.subr.bf16.mxu0 0
    %1722 = vmatpush1.bf16.msra.mxu0 %v1706
    %1723 = vmatprep.subr.bf16.mxu0 0
    %1724 = vmatpush1.bf16.msra.mxu0 %v1705
    %1725 = vmatprep.subr.bf16.mxu0 0
    %1726 = vmatpush1.bf16.msra.mxu0 %v1704
    %1727 = vmatprep.subr.bf16.mxu0 0
    %1728 = vmatpush1.bf16.msra.mxu0 %v1703
    %1729 = vmatprep.subr.bf16.mxu0 0
    %1730 = vmatpush1.bf16.msra.mxu0 %v1702
    %1731 = vmatprep.subr.bf16.mxu0 0
    %1732 = vmatpush1.bf16.msra.mxu0 %v1701
    %1733 = vmatprep.subr.bf16.mxu0 0
    %1734 = vmatpush2.bf16.msra.mxu0 0
    %1735 = vmatprep.subr.bf16.mxu0 0
    %1736 = vmatpush2.bf16.msra.mxu0 0
    %1737 = vmatprep.subr.bf16.mxu0 0
    %1738 = vmatpush2.bf16.msra.mxu0 0
    %1739 = vmatprep.subr.bf16.mxu0 0
    %1740 = vmatpush2.bf16.msra.mxu0 0
    %1741 = vmatprep.subr.bf16.mxu0 0
    %1742 = vmatpush2.bf16.msra.mxu0 0
    %1743 = vmatprep.subr.bf16.mxu0 0
    %1744 = vmatpush2.bf16.msra.mxu0 0
    %1745 = vmatprep.subr.bf16.mxu0 0
    %1746 = vmatpush2.bf16.msra.mxu0 0
    %1747 = vmatprep.subr.bf16.mxu0 0
    %1748 = vmatpush2.bf16.msra.mxu0 0
    %1749 = vmatprep.mubr.bf16.mxu0 0
    %1750 = vmatmul.mubr.bf16.gmra.mxu0 %v1332
    %v1751 = vpop.f32.mrf.mxu0
    %v1752 = vadd.f32 0.0, %v1751
    %v1753 = vpop.f32.mrf.mxu0
    %v1754 = vpop.f32.mrf.mxu0
    %v1755 = vadd.f32 0.0, %v1754
    %v1756 = vpop.f32.mrf.mxu0
    %1757 = vdwg.mxu0
    %v1758 = vadd.f32 %v1650, %v1752
    %v1759 = vadd.f32 %v1651, %v1755
    %v1760 = vld [vmem:[%s6] sm:$0x1]
    %v1762 = vlaneseq
    %v1763 = vshrl.u32 %v1762, 7
    %v1764 = vsub.s32 0, %v1763
    %v1765 = vrot.slane %v1760, %v1764
    %v1767 = vadd.f32 %v1758, %v1765
    %v1768 = vadd.f32 %v1759, %v1765
    %v1769 = vmax.f32 %v1767, 0.0
    %v1770 = vmax.f32 %v1768, 0.0
    %v1771 = vld [vmem:[%s7] sm:$0xf]
    %v1772 = vld [vmem:[%s7 + $0x4] sm:$0xf]
    %v1773 = vld [vmem:[%s7 + $0x8] sm:$0xf]
    %v1774 = vld [vmem:[%s7 + $0xc] sm:$0xf]
    %v1775 = vld [vmem:[%s7 + $0x10] sm:$0xf]
    %v1776 = vld [vmem:[%s7 + $0x14] sm:$0xf]
    %v1777 = vld [vmem:[%s7 + $0x18] sm:$0xf]
    %v1778 = vld [vmem:[%s7 + $0x1c] sm:$0xf]
    %v1779 = vpack.c.bf16 %v1770, %v1769
    %v1788 = vunpack.c.l.b16 %v1771
    %v1789 = vunpack.c.l.b16 %v1772
    %v1790 = vunpack.c.l.b16 %v1773
    %v1791 = vunpack.c.l.b16 %v1774
    %v1792 = vunpack.c.l.b16 %v1775
    %v1793 = vunpack.c.l.b16 %v1776
    %v1794 = vunpack.c.l.b16 %v1777
    %v1795 = vunpack.c.l.b16 %v1778
    %v1796 = vpack.c.b16 %v1789, %v1788
    %v1797 = vpack.c.b16 %v1791, %v1790
    %v1798 = vpack.c.b16 %v1793, %v1792
    %v1799 = vpack.c.b16 %v1795, %v1794
    %vm1800 = vcmask 130048
    %v1802 = vsel %vm1800, %v1796, 0
    %v1805 = vsel %vm1800, %v1797, 0
    %v1808 = vsel %vm1800, %v1798, 0
    %v1811 = vsel %vm1800, %v1799, 0
    %1813 = vmatprep.subr.bf16.mxu0 0
    %1814 = vmatpush1.bf16.msra.mxu0 0
    %1815 = vmatprep.subr.bf16.mxu0 0
    %1816 = vmatpush1.bf16.msra.mxu0 0
    %1817 = vmatprep.subr.bf16.mxu0 0
    %1818 = vmatpush1.bf16.msra.mxu0 0
    %1819 = vmatprep.subr.bf16.mxu0 0
    %1820 = vmatpush1.bf16.msra.mxu0 0
    %1821 = vmatprep.subr.bf16.mxu0 0
    %1822 = vmatpush1.bf16.msra.mxu0 0
    %1823 = vmatprep.subr.bf16.mxu0 0
    %1824 = vmatpush1.bf16.msra.mxu0 0
    %1825 = vmatprep.subr.bf16.mxu0 0
    %1826 = vmatpush1.bf16.msra.mxu0 0
    %1827 = vmatprep.subr.bf16.mxu0 0
    %1828 = vmatpush1.bf16.msra.mxu0 %v1779
    %1829 = vmatprep.subr.bf16.mxu0 0
    %1830 = vmatpush2.bf16.msra.mxu0 0
    %1831 = vmatprep.subr.bf16.mxu0 0
    %1832 = vmatpush2.bf16.msra.mxu0 0
    %1833 = vmatprep.subr.bf16.mxu0 0
    %1834 = vmatpush2.bf16.msra.mxu0 0
    %1835 = vmatprep.subr.bf16.mxu0 0
    %1836 = vmatpush2.bf16.msra.mxu0 0
    %1837 = vmatprep.subr.bf16.mxu0 0
    %1838 = vmatpush2.bf16.msra.mxu0 0
    %1839 = vmatprep.subr.bf16.mxu0 0
    %1840 = vmatpush2.bf16.msra.mxu0 0
    %1841 = vmatprep.subr.bf16.mxu0 0
    %1842 = vmatpush2.bf16.msra.mxu0 0
    %1843 = vmatprep.subr.bf16.mxu0 0
    %1844 = vmatpush2.bf16.msra.mxu0 0
    %1845 = vmatprep.mubr.bf16.mxu0 0
    %1846 = vmatmul.mubr.bf16.gmra.mxu0 %v1802
    %v1847 = vpop.f32.mrf.mxu0
    %v1848 = vadd.f32 0.0, %v1847
    %v1849 = vpop.f32.mrf.mxu0
    %v1850 = vpop.f32.mrf.mxu0
    %v1851 = vadd.f32 0.0, %v1850
    %v1852 = vpop.f32.mrf.mxu0
    %1853 = vmatprep.mubr.bf16.mxu0 0
    %1854 = vmatmul.mubr.bf16.gmra.mxu0 %v1805
    %v1855 = vpop.f32.mrf.mxu0
    %v1856 = vadd.f32 0.0, %v1855
    %v1857 = vpop.f32.mrf.mxu0
    %v1858 = vpop.f32.mrf.mxu0
    %v1859 = vadd.f32 0.0, %v1858
    %v1860 = vpop.f32.mrf.mxu0
    %1861 = vmatprep.mubr.bf16.mxu0 0
    %1862 = vmatmul.mubr.bf16.gmra.mxu0 %v1808
    %v1863 = vpop.f32.mrf.mxu0
    %v1864 = vadd.f32 0.0, %v1863
    %v1865 = vpop.f32.mrf.mxu0
    %v1866 = vpop.f32.mrf.mxu0
    %v1867 = vadd.f32 0.0, %v1866
    %v1868 = vpop.f32.mrf.mxu0
    %1869 = vmatprep.mubr.bf16.mxu0 0
    %1870 = vmatmul.mubr.bf16.gmra.mxu0 %v1811
    %v1871 = vpop.f32.mrf.mxu0
    %v1872 = vadd.f32 0.0, %v1871
    %v1873 = vpop.f32.mrf.mxu0
    %v1874 = vpop.f32.mrf.mxu0
    %v1875 = vadd.f32 0.0, %v1874
    %v1876 = vpop.f32.mrf.mxu0
    %1877 = vdwg.mxu0
    %v1878 = vpack.c.bf16 %v1851, %v1848
    %v1879 = vpack.c.bf16 %v1859, %v1856
    %v1880 = vpack.c.bf16 %v1867, %v1864
    %v1881 = vpack.c.bf16 %v1875, %v1872
    %v1882 = vld [vmem:[#allocation7] sm:$0xf]
    %v1883 = vld [vmem:[#allocation7 + $0x4] sm:$0xf]
    %v1884 = vld [vmem:[#allocation7 + $0x8] sm:$0xf]
    %v1885 = vld [vmem:[#allocation7 + $0xc] sm:$0xf]
    %v1886 = vld [vmem:[#allocation7 + $0x10] sm:$0xf]
    %v1887 = vld [vmem:[#allocation7 + $0x14] sm:$0xf]
    %v1888 = vld [vmem:[#allocation7 + $0x18] sm:$0xf]
    %v1889 = vld [vmem:[#allocation7 + $0x1c] sm:$0xf]
    %v1890 = vld [vmem:[#allocation7 + $0x20] sm:$0xf]
    %v1891 = vld [vmem:[#allocation7 + $0x24] sm:$0xf]
    %v1892 = vld [vmem:[#allocation7 + $0x28] sm:$0xf]
    %v1893 = vld [vmem:[#allocation7 + $0x2c] sm:$0xf]
    %v1894 = vld [vmem:[#allocation7 + $0x30] sm:$0xf]
    %v1895 = vld [vmem:[#allocation7 + $0x34] sm:$0xf]
    %v1896 = vld [vmem:[#allocation7 + $0x38] sm:$0xf]
    %v1897 = vld [vmem:[#allocation7 + $0x3c] sm:$0xf]
    %s1898 = scalar_lea.vmem [#allocation7], 64
    %v1899 = vld [vmem:[%s1898] sm:$0xf]
    %v1900 = vld [vmem:[%s1898 + $0x4] sm:$0xf]
    %v1901 = vld [vmem:[%s1898 + $0x8] sm:$0xf]
    %v1902 = vld [vmem:[%s1898 + $0xc] sm:$0xf]
    %v1903 = vld [vmem:[%s1898 + $0x10] sm:$0xf]
    %v1904 = vld [vmem:[%s1898 + $0x14] sm:$0xf]
    %v1905 = vld [vmem:[%s1898 + $0x18] sm:$0xf]
    %v1906 = vld [vmem:[%s1898 + $0x1c] sm:$0xf]
    %v1907 = vld [vmem:[%s1898 + $0x20] sm:$0xf]
    %v1908 = vld [vmem:[%s1898 + $0x24] sm:$0xf]
    %v1909 = vld [vmem:[%s1898 + $0x28] sm:$0xf]
    %v1910 = vld [vmem:[%s1898 + $0x2c] sm:$0xf]
    %v1911 = vld [vmem:[%s1898 + $0x30] sm:$0xf]
    %v1912 = vld [vmem:[%s1898 + $0x34] sm:$0xf]
    %v1913 = vld [vmem:[%s1898 + $0x38] sm:$0xf]
    %v1914 = vld [vmem:[%s1898 + $0x3c] sm:$0xf]
    %v1931 = vunpack.c.l.b16 %v1899
    %v1932 = vunpack.c.l.b16 %v1900
    %v1933 = vunpack.c.l.b16 %v1901
    %v1934 = vunpack.c.l.b16 %v1902
    %v1935 = vunpack.c.l.b16 %v1903
    %v1936 = vunpack.c.l.b16 %v1904
    %v1937 = vunpack.c.l.b16 %v1905
    %v1938 = vunpack.c.l.b16 %v1906
    %v1939 = vunpack.c.l.b16 %v1907
    %v1940 = vunpack.c.l.b16 %v1908
    %v1941 = vunpack.c.l.b16 %v1909
    %v1942 = vunpack.c.l.b16 %v1910
    %v1943 = vunpack.c.l.b16 %v1911
    %v1944 = vunpack.c.l.b16 %v1912
    %v1945 = vunpack.c.l.b16 %v1913
    %v1946 = vunpack.c.l.b16 %v1914
    %v1947 = vpack.c.b16 %v1932, %v1931
    %v1948 = vpack.c.b16 %v1934, %v1933
    %v1949 = vpack.c.b16 %v1936, %v1935
    %v1950 = vpack.c.b16 %v1938, %v1937
    %v1951 = vpack.c.b16 %v1940, %v1939
    %v1952 = vpack.c.b16 %v1942, %v1941
    %v1953 = vpack.c.b16 %v1944, %v1943
    %v1954 = vpack.c.b16 %v1946, %v1945
    %1963 = vmatprep.subr.bf16.mxu0 0
    %1964 = vmatpush1.bf16.msra.mxu0 %v1954
    %1965 = vmatprep.subr.bf16.mxu0 0
    %1966 = vmatpush1.bf16.msra.mxu0 %v1953
    %1967 = vmatprep.subr.bf16.mxu0 0
    %1968 = vmatpush1.bf16.msra.mxu0 %v1952
    %1969 = vmatprep.subr.bf16.mxu0 0
    %1970 = vmatpush1.bf16.msra.mxu0 %v1951
    %1971 = vmatprep.subr.bf16.mxu0 0
    %1972 = vmatpush1.bf16.msra.mxu0 %v1950
    %1973 = vmatprep.subr.bf16.mxu0 0
    %1974 = vmatpush1.bf16.msra.mxu0 %v1949
    %1975 = vmatprep.subr.bf16.mxu0 0
    %1976 = vmatpush1.bf16.msra.mxu0 %v1948
    %1977 = vmatprep.subr.bf16.mxu0 0
    %1978 = vmatpush1.bf16.msra.mxu0 %v1947
    %1979 = vmatprep.subr.bf16.mxu0 0
    %1980 = vmatpush2.bf16.msra.mxu0 0
    %1981 = vmatprep.subr.bf16.mxu0 0
    %1982 = vmatpush2.bf16.msra.mxu0 0
    %1983 = vmatprep.subr.bf16.mxu0 0
    %1984 = vmatpush2.bf16.msra.mxu0 0
    %1985 = vmatprep.subr.bf16.mxu0 0
    %1986 = vmatpush2.bf16.msra.mxu0 0
    %1987 = vmatprep.subr.bf16.mxu0 0
    %1988 = vmatpush2.bf16.msra.mxu0 0
    %1989 = vmatprep.subr.bf16.mxu0 0
    %1990 = vmatpush2.bf16.msra.mxu0 0
    %1991 = vmatprep.subr.bf16.mxu0 0
    %1992 = vmatpush2.bf16.msra.mxu0 0
    %1993 = vmatprep.subr.bf16.mxu0 0
    %1994 = vmatpush2.bf16.msra.mxu0 0
    %1995 = vmatprep.mubr.bf16.mxu0 0
    %1996 = vmatmul.mubr.bf16.gmra.mxu0 %v1879
    %v1997 = vpop.f32.mrf.mxu0
    %v1998 = vadd.f32 0.0, %v1997
    %v1999 = vpop.f32.mrf.mxu0
    %v2000 = vpop.f32.mrf.mxu0
    %v2001 = vadd.f32 0.0, %v2000
    %v2002 = vpop.f32.mrf.mxu0
    %2003 = vdwg.mxu0
    %v2020 = vunpack.c.l.b16 %v1882
    %v2021 = vunpack.c.l.b16 %v1883
    %v2022 = vunpack.c.l.b16 %v1884
    %v2023 = vunpack.c.l.b16 %v1885
    %v2024 = vunpack.c.l.b16 %v1886
    %v2025 = vunpack.c.l.b16 %v1887
    %v2026 = vunpack.c.l.b16 %v1888
    %v2027 = vunpack.c.l.b16 %v1889
    %v2028 = vunpack.c.l.b16 %v1890
    %v2029 = vunpack.c.l.b16 %v1891
    %v2030 = vunpack.c.l.b16 %v1892
    %v2031 = vunpack.c.l.b16 %v1893
    %v2032 = vunpack.c.l.b16 %v1894
    %v2033 = vunpack.c.l.b16 %v1895
    %v2034 = vunpack.c.l.b16 %v1896
    %v2035 = vunpack.c.l.b16 %v1897
    %v2036 = vpack.c.b16 %v2021, %v2020
    %v2037 = vpack.c.b16 %v2023, %v2022
    %v2038 = vpack.c.b16 %v2025, %v2024
    %v2039 = vpack.c.b16 %v2027, %v2026
    %v2040 = vpack.c.b16 %v2029, %v2028
    %v2041 = vpack.c.b16 %v2031, %v2030
    %v2042 = vpack.c.b16 %v2033, %v2032
    %v2043 = vpack.c.b16 %v2035, %v2034
    %2052 = vmatprep.subr.bf16.mxu0 0
    %2053 = vmatpush1.bf16.msra.mxu0 %v2043
    %2054 = vmatprep.subr.bf16.mxu0 0
    %2055 = vmatpush1.bf16.msra.mxu0 %v2042
    %2056 = vmatprep.subr.bf16.mxu0 0
    %2057 = vmatpush1.bf16.msra.mxu0 %v2041
    %2058 = vmatprep.subr.bf16.mxu0 0
    %2059 = vmatpush1.bf16.msra.mxu0 %v2040
    %2060 = vmatprep.subr.bf16.mxu0 0
    %2061 = vmatpush1.bf16.msra.mxu0 %v2039
    %2062 = vmatprep.subr.bf16.mxu0 0
    %2063 = vmatpush1.bf16.msra.mxu0 %v2038
    %2064 = vmatprep.subr.bf16.mxu0 0
    %2065 = vmatpush1.bf16.msra.mxu0 %v2037
    %2066 = vmatprep.subr.bf16.mxu0 0
    %2067 = vmatpush1.bf16.msra.mxu0 %v2036
    %2068 = vmatprep.subr.bf16.mxu0 0
    %2069 = vmatpush2.bf16.msra.mxu0 0
    %2070 = vmatprep.subr.bf16.mxu0 0
    %2071 = vmatpush2.bf16.msra.mxu0 0
    %2072 = vmatprep.subr.bf16.mxu0 0
    %2073 = vmatpush2.bf16.msra.mxu0 0
    %2074 = vmatprep.subr.bf16.mxu0 0
    %2075 = vmatpush2.bf16.msra.mxu0 0
    %2076 = vmatprep.subr.bf16.mxu0 0
    %2077 = vmatpush2.bf16.msra.mxu0 0
    %2078 = vmatprep.subr.bf16.mxu0 0
    %2079 = vmatpush2.bf16.msra.mxu0 0
    %2080 = vmatprep.subr.bf16.mxu0 0
    %2081 = vmatpush2.bf16.msra.mxu0 0
    %2082 = vmatprep.subr.bf16.mxu0 0
    %2083 = vmatpush2.bf16.msra.mxu0 0
    %2084 = vmatprep.mubr.bf16.mxu0 0
    %2085 = vmatmul.mubr.bf16.gmra.mxu0 %v1878
    %v2086 = vpop.f32.mrf.mxu0
    %v2087 = vadd.f32 %v1998, %v2086
    %v2088 = vpop.f32.mrf.mxu0
    %v2089 = vpop.f32.mrf.mxu0
    %v2090 = vadd.f32 %v2001, %v2089
    %v2091 = vpop.f32.mrf.mxu0
    %2092 = vdwg.mxu0
    %s2093 = scalar_lea.vmem [#allocation7], 128
    %v2094 = vld [vmem:[%s2093] sm:$0xf]
    %v2095 = vld [vmem:[%s2093 + $0x4] sm:$0xf]
    %v2096 = vld [vmem:[%s2093 + $0x8] sm:$0xf]
    %v2097 = vld [vmem:[%s2093 + $0xc] sm:$0xf]
    %v2098 = vld [vmem:[%s2093 + $0x10] sm:$0xf]
    %v2099 = vld [vmem:[%s2093 + $0x14] sm:$0xf]
    %v2100 = vld [vmem:[%s2093 + $0x18] sm:$0xf]
    %v2101 = vld [vmem:[%s2093 + $0x1c] sm:$0xf]
    %v2102 = vld [vmem:[%s2093 + $0x20] sm:$0xf]
    %v2103 = vld [vmem:[%s2093 + $0x24] sm:$0xf]
    %v2104 = vld [vmem:[%s2093 + $0x28] sm:$0xf]
    %v2105 = vld [vmem:[%s2093 + $0x2c] sm:$0xf]
    %v2106 = vld [vmem:[%s2093 + $0x30] sm:$0xf]
    %v2107 = vld [vmem:[%s2093 + $0x34] sm:$0xf]
    %v2108 = vld [vmem:[%s2093 + $0x38] sm:$0xf]
    %v2109 = vld [vmem:[%s2093 + $0x3c] sm:$0xf]
    %v2126 = vunpack.c.l.b16 %v2094
    %v2127 = vunpack.c.l.b16 %v2095
    %v2128 = vunpack.c.l.b16 %v2096
    %v2129 = vunpack.c.l.b16 %v2097
    %v2130 = vunpack.c.l.b16 %v2098
    %v2131 = vunpack.c.l.b16 %v2099
    %v2132 = vunpack.c.l.b16 %v2100
    %v2133 = vunpack.c.l.b16 %v2101
    %v2134 = vunpack.c.l.b16 %v2102
    %v2135 = vunpack.c.l.b16 %v2103
    %v2136 = vunpack.c.l.b16 %v2104
    %v2137 = vunpack.c.l.b16 %v2105
    %v2138 = vunpack.c.l.b16 %v2106
    %v2139 = vunpack.c.l.b16 %v2107
    %v2140 = vunpack.c.l.b16 %v2108
    %v2141 = vunpack.c.l.b16 %v2109
    %v2142 = vpack.c.b16 %v2127, %v2126
    %v2143 = vpack.c.b16 %v2129, %v2128
    %v2144 = vpack.c.b16 %v2131, %v2130
    %v2145 = vpack.c.b16 %v2133, %v2132
    %v2146 = vpack.c.b16 %v2135, %v2134
    %v2147 = vpack.c.b16 %v2137, %v2136
    %v2148 = vpack.c.b16 %v2139, %v2138
    %v2149 = vpack.c.b16 %v2141, %v2140
    %2158 = vmatprep.subr.bf16.mxu0 0
    %2159 = vmatpush1.bf16.msra.mxu0 %v2149
    %2160 = vmatprep.subr.bf16.mxu0 0
    %2161 = vmatpush1.bf16.msra.mxu0 %v2148
    %2162 = vmatprep.subr.bf16.mxu0 0
    %2163 = vmatpush1.bf16.msra.mxu0 %v2147
    %2164 = vmatprep.subr.bf16.mxu0 0
    %2165 = vmatpush1.bf16.msra.mxu0 %v2146
    %2166 = vmatprep.subr.bf16.mxu0 0
    %2167 = vmatpush1.bf16.msra.mxu0 %v2145
    %2168 = vmatprep.subr.bf16.mxu0 0
    %2169 = vmatpush1.bf16.msra.mxu0 %v2144
    %2170 = vmatprep.subr.bf16.mxu0 0
    %2171 = vmatpush1.bf16.msra.mxu0 %v2143
    %2172 = vmatprep.subr.bf16.mxu0 0
    %2173 = vmatpush1.bf16.msra.mxu0 %v2142
    %2174 = vmatprep.subr.bf16.mxu0 0
    %2175 = vmatpush2.bf16.msra.mxu0 0
    %2176 = vmatprep.subr.bf16.mxu0 0
    %2177 = vmatpush2.bf16.msra.mxu0 0
    %2178 = vmatprep.subr.bf16.mxu0 0
    %2179 = vmatpush2.bf16.msra.mxu0 0
    %2180 = vmatprep.subr.bf16.mxu0 0
    %2181 = vmatpush2.bf16.msra.mxu0 0
    %2182 = vmatprep.subr.bf16.mxu0 0
    %2183 = vmatpush2.bf16.msra.mxu0 0
    %2184 = vmatprep.subr.bf16.mxu0 0
    %2185 = vmatpush2.bf16.msra.mxu0 0
    %2186 = vmatprep.subr.bf16.mxu0 0
    %2187 = vmatpush2.bf16.msra.mxu0 0
    %2188 = vmatprep.subr.bf16.mxu0 0
    %2189 = vmatpush2.bf16.msra.mxu0 0
    %2190 = vmatprep.mubr.bf16.mxu0 0
    %2191 = vmatmul.mubr.bf16.gmra.mxu0 %v1880
    %v2192 = vpop.f32.mrf.mxu0
    %v2193 = vadd.f32 0.0, %v2192
    %v2194 = vpop.f32.mrf.mxu0
    %v2195 = vpop.f32.mrf.mxu0
    %v2196 = vadd.f32 0.0, %v2195
    %v2197 = vpop.f32.mrf.mxu0
    %2198 = vdwg.mxu0
    %v2199 = vadd.f32 %v2087, %v2193
    %v2200 = vadd.f32 %v2090, %v2196
    %s2201 = scalar_lea.vmem [#allocation7], 192
    %v2202 = vld [vmem:[%s2201] sm:$0xf]
    %v2203 = vld [vmem:[%s2201 + $0x4] sm:$0xf]
    %v2204 = vld [vmem:[%s2201 + $0x8] sm:$0xf]
    %v2205 = vld [vmem:[%s2201 + $0xc] sm:$0xf]
    %v2206 = vld [vmem:[%s2201 + $0x10] sm:$0xf]
    %v2207 = vld [vmem:[%s2201 + $0x14] sm:$0xf]
    %v2208 = vld [vmem:[%s2201 + $0x18] sm:$0xf]
    %v2209 = vld [vmem:[%s2201 + $0x1c] sm:$0xf]
    %v2210 = vld [vmem:[%s2201 + $0x20] sm:$0xf]
    %v2211 = vld [vmem:[%s2201 + $0x24] sm:$0xf]
    %v2212 = vld [vmem:[%s2201 + $0x28] sm:$0xf]
    %v2213 = vld [vmem:[%s2201 + $0x2c] sm:$0xf]
    %v2214 = vld [vmem:[%s2201 + $0x30] sm:$0xf]
    %v2215 = vld [vmem:[%s2201 + $0x34] sm:$0xf]
    %v2216 = vld [vmem:[%s2201 + $0x38] sm:$0xf]
    %v2217 = vld [vmem:[%s2201 + $0x3c] sm:$0xf]
    %v2234 = vunpack.c.l.b16 %v2202
    %v2235 = vunpack.c.l.b16 %v2203
    %v2236 = vunpack.c.l.b16 %v2204
    %v2237 = vunpack.c.l.b16 %v2205
    %v2238 = vunpack.c.l.b16 %v2206
    %v2239 = vunpack.c.l.b16 %v2207
    %v2240 = vunpack.c.l.b16 %v2208
    %v2241 = vunpack.c.l.b16 %v2209
    %v2242 = vunpack.c.l.b16 %v2210
    %v2243 = vunpack.c.l.b16 %v2211
    %v2244 = vunpack.c.l.b16 %v2212
    %v2245 = vunpack.c.l.b16 %v2213
    %v2246 = vunpack.c.l.b16 %v2214
    %v2247 = vunpack.c.l.b16 %v2215
    %v2248 = vunpack.c.l.b16 %v2216
    %v2249 = vunpack.c.l.b16 %v2217
    %v2250 = vpack.c.b16 %v2235, %v2234
    %v2251 = vpack.c.b16 %v2237, %v2236
    %v2252 = vpack.c.b16 %v2239, %v2238
    %v2253 = vpack.c.b16 %v2241, %v2240
    %v2254 = vpack.c.b16 %v2243, %v2242
    %v2255 = vpack.c.b16 %v2245, %v2244
    %v2256 = vpack.c.b16 %v2247, %v2246
    %v2257 = vpack.c.b16 %v2249, %v2248
    %2266 = vmatprep.subr.bf16.mxu0 0
    %2267 = vmatpush1.bf16.msra.mxu0 %v2257
    %2268 = vmatprep.subr.bf16.mxu0 0
    %2269 = vmatpush1.bf16.msra.mxu0 %v2256
    %2270 = vmatprep.subr.bf16.mxu0 0
    %2271 = vmatpush1.bf16.msra.mxu0 %v2255
    %2272 = vmatprep.subr.bf16.mxu0 0
    %2273 = vmatpush1.bf16.msra.mxu0 %v2254
    %2274 = vmatprep.subr.bf16.mxu0 0
    %2275 = vmatpush1.bf16.msra.mxu0 %v2253
    %2276 = vmatprep.subr.bf16.mxu0 0
    %2277 = vmatpush1.bf16.msra.mxu0 %v2252
    %2278 = vmatprep.subr.bf16.mxu0 0
    %2279 = vmatpush1.bf16.msra.mxu0 %v2251
    %2280 = vmatprep.subr.bf16.mxu0 0
    %2281 = vmatpush1.bf16.msra.mxu0 %v2250
    %2282 = vmatprep.subr.bf16.mxu0 0
    %2283 = vmatpush2.bf16.msra.mxu0 0
    %2284 = vmatprep.subr.bf16.mxu0 0
    %2285 = vmatpush2.bf16.msra.mxu0 0
    %2286 = vmatprep.subr.bf16.mxu0 0
    %2287 = vmatpush2.bf16.msra.mxu0 0
    %2288 = vmatprep.subr.bf16.mxu0 0
    %2289 = vmatpush2.bf16.msra.mxu0 0
    %2290 = vmatprep.subr.bf16.mxu0 0
    %2291 = vmatpush2.bf16.msra.mxu0 0
    %2292 = vmatprep.subr.bf16.mxu0 0
    %2293 = vmatpush2.bf16.msra.mxu0 0
    %2294 = vmatprep.subr.bf16.mxu0 0
    %2295 = vmatpush2.bf16.msra.mxu0 0
    %2296 = vmatprep.subr.bf16.mxu0 0
    %2297 = vmatpush2.bf16.msra.mxu0 0
    %2298 = vmatprep.mubr.bf16.mxu0 0
    %2299 = vmatmul.mubr.bf16.gmra.mxu0 %v1881
    %v2300 = vpop.f32.mrf.mxu0
    %v2301 = vadd.f32 0.0, %v2300
    %v2302 = vpop.f32.mrf.mxu0
    %v2303 = vpop.f32.mrf.mxu0
    %v2304 = vadd.f32 0.0, %v2303
    %v2305 = vpop.f32.mrf.mxu0
    %2306 = vdwg.mxu0
    %v2307 = vadd.f32 %v2199, %v2301
    %v2308 = vadd.f32 %v2200, %v2304
    %v2309 = vld [vmem:[%s9] sm:$0x1]
    %v2311 = vlaneseq
    %v2312 = vshrl.u32 %v2311, 7
    %v2313 = vsub.s32 0, %v2312
    %v2314 = vrot.slane %v2309, %v2313
    %v2316 = vadd.f32 %v2307, %v2314
    %v2317 = vadd.f32 %v2308, %v2314
    %v2318 = vmax.f32 %v2316, 0.0
    %v2319 = vmax.f32 %v2317, 0.0
    %v2320 = vld [vmem:[%s10] sm:$0xff]
    %v2322 = vsel %vm1800, %v2320, 0
    %2324 = vmatprep.subr.mxu0 0.0
    %2325 = vmatpush1.msra.mxu0 0.0
    %2326 = vmatprep.subr.mxu0 0.0
    %2327 = vmatpush1.msra.mxu0 0.0
    %2328 = vmatprep.subr.mxu0 0.0
    %2329 = vmatpush1.msra.mxu0 0.0
    %2330 = vmatprep.subr.mxu0 0.0
    %2331 = vmatpush1.msra.mxu0 0.0
    %2332 = vmatprep.subr.mxu0 0.0
    %2333 = vmatpush1.msra.mxu0 0.0
    %2334 = vmatprep.subr.mxu0 0.0
    %2335 = vmatpush1.msra.mxu0 0.0
    %2336 = vmatprep.subr.mxu0 0.0
    %2337 = vmatpush1.msra.mxu0 0.0
    %2338 = vmatprep.subr.mxu0 0.0
    %2339 = vmatpush1.msra.mxu0 0.0
    %2340 = vmatprep.subr.mxu0 0.0
    %2341 = vmatpush1.msra.mxu0 0.0
    %2342 = vmatprep.subr.mxu0 0.0
    %2343 = vmatpush1.msra.mxu0 0.0
    %2344 = vmatprep.subr.mxu0 0.0
    %2345 = vmatpush1.msra.mxu0 0.0
    %2346 = vmatprep.subr.mxu0 0.0
    %2347 = vmatpush1.msra.mxu0 0.0
    %2348 = vmatprep.subr.mxu0 0.0
    %2349 = vmatpush1.msra.mxu0 0.0
    %2350 = vmatprep.subr.mxu0 0.0
    %2351 = vmatpush1.msra.mxu0 0.0
    %2352 = vmatprep.subr.mxu0 0.0
    %2353 = vmatpush1.msra.mxu0 %v2319
    %2354 = vmatprep.subr.mxu0 0.0
    %2355 = vmatpush1.msra.mxu0 %v2318
    %2356 = vmatprep.subr.mxu0 0.0
    %2357 = vmatpush2.msra.mxu0 0.0
    %2358 = vmatprep.subr.mxu0 0.0
    %2359 = vmatpush2.msra.mxu0 0.0
    %2360 = vmatprep.subr.mxu0 0.0
    %2361 = vmatpush2.msra.mxu0 0.0
    %2362 = vmatprep.subr.mxu0 0.0
    %2363 = vmatpush2.msra.mxu0 0.0
    %2364 = vmatprep.subr.mxu0 0.0
    %2365 = vmatpush2.msra.mxu0 0.0
    %2366 = vmatprep.subr.mxu0 0.0
    %2367 = vmatpush2.msra.mxu0 0.0
    %2368 = vmatprep.subr.mxu0 0.0
    %2369 = vmatpush2.msra.mxu0 0.0
    %2370 = vmatprep.subr.mxu0 0.0
    %2371 = vmatpush2.msra.mxu0 0.0
    %2372 = vmatprep.subr.mxu0 0.0
    %2373 = vmatpush2.msra.mxu0 0.0
    %2374 = vmatprep.subr.mxu0 0.0
    %2375 = vmatpush2.msra.mxu0 0.0
    %2376 = vmatprep.subr.mxu0 0.0
    %2377 = vmatpush2.msra.mxu0 0.0
    %2378 = vmatprep.subr.mxu0 0.0
    %2379 = vmatpush2.msra.mxu0 0.0
    %2380 = vmatprep.subr.mxu0 0.0
    %2381 = vmatpush2.msra.mxu0 0.0
    %2382 = vmatprep.subr.mxu0 0.0
    %2383 = vmatpush2.msra.mxu0 0.0
    %2384 = vmatprep.subr.mxu0 0.0
    %2385 = vmatpush2.msra.mxu0 0.0
    %2386 = vmatprep.subr.mxu0 0.0
    %2387 = vmatpush2.msra.mxu0 0.0
    %2388 = vmatprep.mubr.f32.mxu0 0.0
    %2389 = vmatmul.mubr.f32.gmra.mxu0 %v2322
    %v2390 = vpop.f32.mrf.mxu0
    %v2391 = vadd.f32 0.0, %v2390
    %v2392 = vpop.f32.mrf.mxu0
    %2393 = vdwg.mxu0
    %v2394 = vld [vmem:[%s11] sm:$0xff]
    %v2395 = vld [vmem:[%s11 + $0x8] sm:$0xff]
    %v2396 = vld [vmem:[%s11 + $0x10] sm:$0xff]
    %v2397 = vld [vmem:[%s11 + $0x18] sm:$0xff]
    %v2398 = vld [vmem:[%s11 + $0x20] sm:$0xff]
    %v2399 = vld [vmem:[%s11 + $0x28] sm:$0xff]
    %v2400 = vld [vmem:[%s11 + $0x30] sm:$0xff]
    %v2401 = vld [vmem:[%s11 + $0x38] sm:$0xff]
    %v2402 = vld [vmem:[%s11 + $0x40] sm:$0xff]
    %v2403 = vld [vmem:[%s11 + $0x48] sm:$0xff]
    %v2404 = vld [vmem:[%s11 + $0x50] sm:$0xff]
    %v2405 = vld [vmem:[%s11 + $0x58] sm:$0xff]
    %v2406 = vld [vmem:[%s11 + $0x60] sm:$0xff]
    %v2407 = vld [vmem:[%s11 + $0x68] sm:$0xff]
    %v2408 = vld [vmem:[%s11 + $0x70] sm:$0xff]
    %v2409 = vld [vmem:[%s11 + $0x78] sm:$0xff]
    %2410 = vmatprep.subr.mxu0 0.0
    %2411 = vmatpush1.msra.mxu0 %v2409
    %2412 = vmatprep.subr.mxu0 0.0
    %2413 = vmatpush1.msra.mxu0 %v2408
    %2414 = vmatprep.subr.mxu0 0.0
    %2415 = vmatpush1.msra.mxu0 %v2407
    %2416 = vmatprep.subr.mxu0 0.0
    %2417 = vmatpush1.msra.mxu0 %v2406
    %2418 = vmatprep.subr.mxu0 0.0
    %2419 = vmatpush1.msra.mxu0 %v2405
    %2420 = vmatprep.subr.mxu0 0.0
    %2421 = vmatpush1.msra.mxu0 %v2404
    %2422 = vmatprep.subr.mxu0 0.0
    %2423 = vmatpush1.msra.mxu0 %v2403
    %2424 = vmatprep.subr.mxu0 0.0
    %2425 = vmatpush1.msra.mxu0 %v2402
    %2426 = vmatprep.subr.mxu0 0.0
    %2427 = vmatpush1.msra.mxu0 %v2401
    %2428 = vmatprep.subr.mxu0 0.0
    %2429 = vmatpush1.msra.mxu0 %v2400
    %2430 = vmatprep.subr.mxu0 0.0
    %2431 = vmatpush1.msra.mxu0 %v2399
    %2432 = vmatprep.subr.mxu0 0.0
    %2433 = vmatpush1.msra.mxu0 %v2398
    %2434 = vmatprep.subr.mxu0 0.0
    %2435 = vmatpush1.msra.mxu0 %v2397
    %2436 = vmatprep.subr.mxu0 0.0
    %2437 = vmatpush1.msra.mxu0 %v2396
    %2438 = vmatprep.subr.mxu0 0.0
    %2439 = vmatpush1.msra.mxu0 %v2395
    %2440 = vmatprep.subr.mxu0 0.0
    %2441 = vmatpush1.msra.mxu0 %v2394
    %2442 = vmatprep.subr.mxu0 0.0
    %2443 = vmatpush2.msra.mxu0 0.0
    %2444 = vmatprep.subr.mxu0 0.0
    %2445 = vmatpush2.msra.mxu0 0.0
    %2446 = vmatprep.subr.mxu0 0.0
    %2447 = vmatpush2.msra.mxu0 0.0
    %2448 = vmatprep.subr.mxu0 0.0
    %2449 = vmatpush2.msra.mxu0 0.0
    %2450 = vmatprep.subr.mxu0 0.0
    %2451 = vmatpush2.msra.mxu0 0.0
    %2452 = vmatprep.subr.mxu0 0.0
    %2453 = vmatpush2.msra.mxu0 0.0
    %2454 = vmatprep.subr.mxu0 0.0
    %2455 = vmatpush2.msra.mxu0 0.0
    %2456 = vmatprep.subr.mxu0 0.0
    %2457 = vmatpush2.msra.mxu0 0.0
    %2458 = vmatprep.subr.mxu0 0.0
    %2459 = vmatpush2.msra.mxu0 0.0
    %2460 = vmatprep.subr.mxu0 0.0
    %2461 = vmatpush2.msra.mxu0 0.0
    %2462 = vmatprep.subr.mxu0 0.0
    %2463 = vmatpush2.msra.mxu0 0.0
    %2464 = vmatprep.subr.mxu0 0.0
    %2465 = vmatpush2.msra.mxu0 0.0
    %2466 = vmatprep.subr.mxu0 0.0
    %2467 = vmatpush2.msra.mxu0 0.0
    %2468 = vmatprep.subr.mxu0 0.0
    %2469 = vmatpush2.msra.mxu0 0.0
    %2470 = vmatprep.subr.mxu0 0.0
    %2471 = vmatpush2.msra.mxu0 0.0
    %2472 = vmatprep.subr.mxu0 0.0
    %2473 = vmatpush2.msra.mxu0 0.0
    %2474 = vmatprep.mubr.f32.mxu0 0.0
    %2475 = vmatmul.mubr.f32.gmra.mxu0 %v2391
    %v2476 = vpop.f32.mrf.mxu0
    %v2477 = vadd.f32 0.0, %v2476
    %v2478 = vpop.f32.mrf.mxu0
    %2479 = vdwg.mxu0
    %2480 = vst [vmem:[#allocation8] sm:$0xff] %v2477
    // Predicated region
    $region62: #{tpu_custom_call.1} parent=1 // pred_check
      _
    $region63: #{tpu_custom_call.1} parent=1 // pred_check_branch
      %2482 = sbr.rel (0) target = $region65
    $region64: #{tpu_custom_call.1} parent=1 // pred_region
      %s2484 = ssub.s32 128, 128
      %2485 = vsyncadd [#allocation4], %s2484
      %s2487 = sshll.u32 [#allocation8], 4
      %s2488 = int_to_ptr.vmem [resolvable:$true] %s2487
      %2490 = dma.vmem_to_hbm [thread:$0]  %s2488, 128, %s12, [#allocation4]
    $region65: #{tpu_custom_call.1} parent=1 // pred_fallthru
      _
    // Predicated region
    $region66: #{tpu_custom_call.1} parent=1 // pred_check
      _
    $region67: #{tpu_custom_call.1} parent=1 // pred_check_branch
      %2492 = sbr.rel (0) target = $region69
    $region68: #{tpu_custom_call.1} parent=1 // pred_region
      %2493 = dma.done [#allocation4], 128
    $region69: #{tpu_custom_call.1} parent=1 // pred_fallthru
      _
    %2494 = vsyncpa [#allocation3], 1
    %2495 = vsyncpa [#allocation6], 1
    %2496 = vsyncpa [#allocation4], 1

</llo_original>
